<compile_context>
chip_gen: v6e
topology: v6e:2x2x1
jax: 0.10.0
libtpu: 0.0.40
codegen_flags: <defaults>
</compile_context>

<pallas_src>
import jax
import jax.numpy as jnp
from jax import lax
from jax.experimental import pallas as pl
from jax.experimental.pallas import tpu as pltpu


# ---------------------------------------------------------------------------
# Kernel
# ---------------------------------------------------------------------------
def _bilstm_kernel(xf_ref, xb_ref, w_ref, b_ref, out_ref, h_ref, c_ref):
    """Fused bidirectional LSTM over one sequence chunk.

    xf_ref:  (B, TC, D)      bf16  forward-time input chunk
    xb_ref:  (B, TC, D)      bf16  mirrored chunk (backward direction's input)
    w_ref:   (2D+2H, 8H)     bf16  block-diagonal fused weights (both dirs)
    b_ref:   (1, 8H)         f32   fused bias (b_ih + b_hh, both dirs)
    out_ref: (B, TC, 2H)     f32   [fwd hidden, bwd hidden] per timestep
    h_ref:   (B, 2H)         f32   scratch, carried across grid steps
    c_ref:   (B, 2H)         f32   scratch, carried across grid steps
    """
    B, TC, _ = xf_ref.shape
    H2 = h_ref.shape[1]  # 2H (fwd ‖ bwd hidden)

    @pl.when(pl.program_id(0) == 0)
    def _():
        h_ref[...] = jnp.zeros_like(h_ref)
        c_ref[...] = jnp.zeros_like(c_ref)

    w = w_ref[...]                                            # resident weights
    b_full = jnp.broadcast_to(b_ref[...], (B, 4 * H2))        # hoisted broadcast

    def step(i, carry):
        h_all, c_all = carry                                  # (B, 2H) f32
        x_f = xf_ref[:, i, :]                                 # (B, D) bf16
        x_b = xb_ref[:, TC - 1 - i, :]                        # reversed time
        lhs = jnp.concatenate(
            [x_f, x_b, h_all.astype(jnp.bfloat16)], axis=1)   # (B, 2D+2H) bf16
        gates = jnp.dot(lhs, w, preferred_element_type=jnp.float32) + b_full
        i_g = jax.nn.sigmoid(gates[:, 0 * H2:1 * H2])
        f_g = jax.nn.sigmoid(gates[:, 1 * H2:2 * H2])
        g_g = jnp.tanh(gates[:, 2 * H2:3 * H2])
        o_g = jax.nn.sigmoid(gates[:, 3 * H2:4 * H2])
        c_new = f_g * c_all + i_g * g_g
        h_new = o_g * jnp.tanh(c_new)
        out_ref[:, i, :] = h_new.astype(out_ref.dtype)
        return (h_new, c_new)

    unroll = True if TC <= 32 else 4
    h_fin, c_fin = lax.fori_loop(0, TC, step, (h_ref[...], c_ref[...]),
                                 unroll=unroll)
    h_ref[...] = h_fin
    c_ref[...] = c_fin


# ---------------------------------------------------------------------------
# Wrapper
# ---------------------------------------------------------------------------
def _pick_chunk(T, cap=64):
    """Sequence-chunk length: full T if small, else a multiple-of-8 divisor."""
    if T <= cap:
        return T
    for c in range(cap, 7, -8):
        if T % c == 0:
            return c
    return T  # fallback: whole sequence resident (always legal)


@jax.jit
def bilstm_forward(x, fused):
    """Reproduces BiLSTM.forward: returns (output, (1, 1))."""
    B, T, D = x.shape
    w_big = fused["w"]        # (2D+2H, 8H) bf16
    b_big = fused["b"]        # (1, 8H)     f32
    H2 = b_big.shape[1] // 4  # 2H

    B_pad = ((B + 7) // 8) * 8
    TC = _pick_chunk(T)
    G = T // TC

    x_bf = x.astype(jnp.bfloat16)
    if B_pad != B:
        x_bf = jnp.pad(x_bf, ((0, B_pad - B), (0, 0), (0, 0)))

    out = pl.pallas_call(
        _bilstm_kernel,
        out_shape=jax.ShapeDtypeStruct((B_pad, T, H2), jnp.float32),
        grid_spec=pltpu.PrefetchScalarGridSpec(
            num_scalar_prefetch=0,
            grid=(G,),
            in_specs=[
                pl.BlockSpec((B_pad, TC, D), lambda g: (0, g, 0)),
                pl.BlockSpec((B_pad, TC, D), lambda g, G=G: (0, G - 1 - g, 0)),
                pl.BlockSpec((2 * D + H2, 4 * H2), lambda g: (0, 0)),
                pl.BlockSpec((1, 4 * H2), lambda g: (0, 0)),
            ],
            out_specs=pl.BlockSpec((B_pad, TC, H2), lambda g: (0, g, 0)),
            scratch_shapes=[pltpu.VMEM((B_pad, H2), jnp.float32),
                            pltpu.VMEM((B_pad, H2), jnp.float32)],
        ),
        compiler_params=pltpu.CompilerParams(
            dimension_semantics=("arbitrary",)),
    )(x_bf, x_bf, w_big, b_big)

    output = out[:B]
    return output, (1, 1)


# ---------------------------------------------------------------------------
# Parameters
# ---------------------------------------------------------------------------
def init_bilstm_params(key, hidden_size):
    """Deterministic params matching nn.LSTM(hidden_size, hidden_size // 2)."""
    H = hidden_size // 2
    D = hidden_size
    bound = 1.0 / jnp.sqrt(jnp.float32(H))
    keys = jax.random.split(key, 8)

    def u(k, shape):
        return jax.random.uniform(k, shape, jnp.float32, -bound, bound)

    params = {}
    for d, off in (("fwd", 0), ("bwd", 4)):
        w_ih = u(keys[off + 0], (4 * H, D))      # PyTorch layout (4H, D)
        w_hh = u(keys[off + 1], (4 * H, H))      # PyTorch layout (4H, H)
        b_ih = u(keys[off + 2], (4 * H,))
        b_hh = u(keys[off + 3], (4 * H,))
        params[d] = {
            "wih": jnp.transpose(w_ih),          # (D, 4H) for x @ W
            "whh": jnp.transpose(w_hh),          # (H, 4H) for h @ W
            "b": (b_ih + b_hh).reshape(1, 4 * H),
        }
    return params


def fuse_bilstm_params(params, hidden_size):
    """Pack both directions into one block-diagonal bf16 weight + f32 bias.

    LHS row layout:   [x_fwd (D) | x_bwd (D) | h_fwd (H) | h_bwd (H)]
    Gate col layout:  [i_f,i_b | f_f,f_b | g_f,g_b | o_f,o_b] (each width H)
    """
    H = hidden_size // 2
    D = hidden_size
    pf, pb = params["fwd"], params["bwd"]

    w_big = jnp.zeros((2 * D + 2 * H, 8 * H), jnp.float32)
    b_big = jnp.zeros((1, 8 * H), jnp.float32)
    for k in range(4):                                   # gate order i, f, g, o
        gf = slice(k * H, (k + 1) * H)                   # per-direction columns
        cf = slice(k * 2 * H, k * 2 * H + H)             # fused fwd columns
        cb = slice(k * 2 * H + H, (k + 1) * 2 * H)       # fused bwd columns
        w_big = w_big.at[0:D, cf].set(pf["wih"][:, gf])
        w_big = w_big.at[D:2 * D, cb].set(pb["wih"][:, gf])
        w_big = w_big.at[2 * D:2 * D + H, cf].set(pf["whh"][:, gf])
        w_big = w_big.at[2 * D + H:2 * D + 2 * H, cb].set(pb["whh"][:, gf])
        b_big = b_big.at[0, cf].set(pf["b"][0, gf])
        b_big = b_big.at[0, cb].set(pb["b"][0, gf])

    return {"w": w_big.astype(jnp.bfloat16), "b": b_big}


# ---------------------------------------------------------------------------
# Pure-JAX reference (matches the kernel's bf16-matmul numerics)
# ---------------------------------------------------------------------------
def _lstm_reference(x_btd, wih, whh, bias):
    B, T, D = x_btd.shape
    H = whh.shape[0]
    q = lambda a: a.astype(jnp.bfloat16).astype(jnp.float32)
    wih_q, whh_q, x_q = q(wih), q(whh), q(x_btd)

    def step(carry, x_t):
        h, c = carry
        gates = x_t @ wih_q + q(h) @ whh_q + bias
        i_g = jax.nn.sigmoid(gates[:, 0 * H:1 * H])
        f_g = jax.nn.sigmoid(gates[:, 1 * H:2 * H])
        g_g = jnp.tanh(gates[:, 2 * H:3 * H])
        o_g = jax.nn.sigmoid(gates[:, 3 * H:4 * H])
        c = f_g * c + i_g * g_g
        h = o_g * jnp.tanh(c)
        return (h, c), h

    x_tbd = jnp.transpose(x_q, (1, 0, 2))
    (_, _), hs = lax.scan(step, (jnp.zeros((B, H)), jnp.zeros((B, H))), x_tbd)
    return jnp.transpose(hs, (1, 0, 2))


# ---------------------------------------------------------------------------
# Demo / correctness check
# ---------------------------------------------------------------------------
if __name__ == "__main__":
    hidden_size = 32   # -> LSTM hidden H = 16, fused gate width 8H = 128 lanes
    B, T = 2, 8

    key = jax.random.PRNGKey(0)
    k_x, k_p = jax.random.split(key)
    x = jax.random.normal(k_x, (B, T, hidden_size), jnp.float32)

    params = init_bilstm_params(k_p, hidden_size)
    fused = fuse_bilstm_params(params, hidden_size)

    output, state = bilstm_forward(x, fused)
    output = jax.block_until_ready(output)

    # Reference: per-direction LSTM with the same bf16 input/weight rounding.
    ref1 = _lstm_reference(x, params["fwd"]["wih"], params["fwd"]["whh"],
                           params["fwd"]["b"])
    ref2 = _lstm_reference(x[:, ::-1, :], params["bwd"]["wih"],
                           params["bwd"]["whh"], params["bwd"]["b"])
    ref = jnp.concatenate((ref1, ref2), axis=2)

    assert output.shape == (B, T, hidden_size), output.shape
    assert state == (1, 1)
    assert jnp.allclose(output, ref, atol=2e-3, rtol=2e-3), (
        float(jnp.max(jnp.abs(output - ref))))

    print("KERNEL_OK")
</pallas_src>

<mosaic_0001>
module attributes {stable_mosaic.version = 11 : i64} {
  func.func @_bilstm_kernel(%arg0: i32, %arg1: memref<8x8x32xbf16, #tpu.memory_space<vmem>>, %arg2: memref<8x8x32xbf16, #tpu.memory_space<vmem>>, %arg3: memref<96x128xbf16, #tpu.memory_space<vmem>>, %arg4: memref<1x128xf32, #tpu.memory_space<vmem>>, %arg5: memref<8x8x32xf32, #tpu.memory_space<vmem>>, %arg6: memref<8x32xf32, #tpu.memory_space<vmem>>, %arg7: memref<8x32xf32, #tpu.memory_space<vmem>>) attributes {dimension_semantics = [#tpu.dimension_semantics<arbitrary>], iteration_bounds = array<i64: 1>, scalar_prefetch = 0 : i64, scratch_operands = 2 : i64, tpu.core_type = #tpu.core_type<tc>, window_params = [{transform_indices = @transform_0, window_bounds = array<i64: 8, 8, 32>}, {transform_indices = @transform_1, window_bounds = array<i64: 8, 8, 32>}, {pipeline_mode = #tpu.pipeline_mode<synchronous>, transform_indices = @transform_2, window_bounds = array<i64: 96, 128>}, {pipeline_mode = #tpu.pipeline_mode<synchronous>, transform_indices = @transform_3, window_bounds = array<i64: 1, 128>}, {transform_indices = @transform_4, window_bounds = array<i64: 8, 8, 32>}]} {
    %c0_i32 = arith.constant 0 : i32
    %0 = arith.cmpi eq, %arg0, %c0_i32 : i32
    %1 = arith.extui %0 : i1 to i32
    %c0_i32_0 = arith.constant 0 : i32
    %2 = arith.cmpi ne, %1, %c0_i32_0 : i32
    scf.if %2 {
      %cst_100 = arith.constant 0.000000e+00 : f32
      %331 = vector.broadcast %cst_100 : f32 to vector<8x32xf32>
      %c0_101 = arith.constant 0 : index
      %c0_102 = arith.constant 0 : index
      %332 = vector.load %arg6[%c0_101, %c0_102] : memref<8x32xf32, #tpu.memory_space<vmem>>, vector<8x32xf32>
      tpu.vector_store %arg6[%c0_101, %c0_102], %331 {strides = array<i32>} : memref<8x32xf32, #tpu.memory_space<vmem>>, vector<8x32xf32>,
      %cst_103 = arith.constant 0.000000e+00 : f32
      %333 = vector.broadcast %cst_103 : f32 to vector<8x32xf32>
      %c0_104 = arith.constant 0 : index
      %c0_105 = arith.constant 0 : index
      %334 = vector.load %arg7[%c0_104, %c0_105] : memref<8x32xf32, #tpu.memory_space<vmem>>, vector<8x32xf32>
      tpu.vector_store %arg7[%c0_104, %c0_105], %333 {strides = array<i32>} : memref<8x32xf32, #tpu.memory_space<vmem>>, vector<8x32xf32>,
    } else {
    }
    %c0 = arith.constant 0 : index
    %c0_1 = arith.constant 0 : index
    %3 = vector.load %arg3[%c0, %c0_1] : memref<96x128xbf16, #tpu.memory_space<vmem>>, vector<96x128xbf16>
    %c0_2 = arith.constant 0 : index
    %c0_3 = arith.constant 0 : index
    %4 = vector.load %arg4[%c0_2, %c0_3] : memref<1x128xf32, #tpu.memory_space<vmem>>, vector<1x128xf32>
    %5 = vector.shape_cast %4 : vector<1x128xf32> to vector<1x128xf32>
    %6 = vector.broadcast %5 : vector<1x128xf32> to vector<8x128xf32>
    %c0_4 = arith.constant 0 : index
    %c0_5 = arith.constant 0 : index
    %7 = vector.load %arg6[%c0_4, %c0_5] : memref<8x32xf32, #tpu.memory_space<vmem>>, vector<8x32xf32>
    %c0_6 = arith.constant 0 : index
    %c0_7 = arith.constant 0 : index
    %8 = vector.load %arg7[%c0_6, %c0_7] : memref<8x32xf32, #tpu.memory_space<vmem>>, vector<8x32xf32>
    %c0_i32_8 = arith.constant 0 : i32
    %c0_9 = arith.constant 0 : index
    %9 = arith.index_cast %c0_i32_8 : i32 to index
    %c0_10 = arith.constant 0 : index
    %10 = vector.load %arg1[%c0_9, %9, %c0_10] : memref<8x8x32xbf16, #tpu.memory_space<vmem>>, vector<8x1x32xbf16>
    %11 = vector.shape_cast %10 : vector<8x1x32xbf16> to vector<8x32xbf16>
    %c7_i32 = arith.constant 7 : i32
    %12 = arith.subi %c7_i32, %c0_i32_8 : i32
    %c0_11 = arith.constant 0 : index
    %13 = arith.index_cast %12 : i32 to index
    %c0_12 = arith.constant 0 : index
    %14 = vector.load %arg2[%c0_11, %13, %c0_12] : memref<8x8x32xbf16, #tpu.memory_space<vmem>>, vector<8x1x32xbf16>
    %15 = vector.shape_cast %14 : vector<8x1x32xbf16> to vector<8x32xbf16>
    %16 = arith.truncf %7 : vector<8x32xf32> to vector<8x32xbf16>
    %17 = tpu.concatenate %11, %15, %16 in 1 : vector<8x32xbf16>, vector<8x32xbf16>, vector<8x32xbf16> -> vector<8x96xbf16>
    %cst = arith.constant dense<0.000000e+00> : vector<8x128xf32>
    %18 = tpu.matmul %17, %3, %cst {dimension_numbers = #tpu.dot_dimension_numbers<[1], [0], [0], [1], [0, 0, 1, 1], [], []>} : vector<8x96xbf16>, vector<96x128xbf16>, vector<8x128xf32> -> vector<8x128xf32>
    %19 = arith.addf %18, %6 : vector<8x128xf32>
    %20 = vector.extract_strided_slice %19 {offsets = [0, 0], sizes = [8, 32], strides = [1, 1]} : vector<8x128xf32> to vector<8x32xf32>
    %21 = arith.negf %20 : vector<8x32xf32>
    %22 = math.exp %21 : vector<8x32xf32>
    %cst_13 = arith.constant 1.000000e+00 : f32
    %23 = vector.broadcast %cst_13 : f32 to vector<8x32xf32>
    %24 = arith.addf %23, %22 : vector<8x32xf32>
    %25 = arith.divf %23, %24 : vector<8x32xf32>
    %26 = vector.extract_strided_slice %19 {offsets = [0, 32], sizes = [8, 32], strides = [1, 1]} : vector<8x128xf32> to vector<8x32xf32>
    %27 = arith.negf %26 : vector<8x32xf32>
    %28 = math.exp %27 : vector<8x32xf32>
    %cst_14 = arith.constant 1.000000e+00 : f32
    %29 = vector.broadcast %cst_14 : f32 to vector<8x32xf32>
    %30 = arith.addf %29, %28 : vector<8x32xf32>
    %31 = arith.divf %29, %30 : vector<8x32xf32>
    %32 = vector.extract_strided_slice %19 {offsets = [0, 64], sizes = [8, 32], strides = [1, 1]} : vector<8x128xf32> to vector<8x32xf32>
    %33 = math.tanh %32 : vector<8x32xf32>
    %34 = vector.extract_strided_slice %19 {offsets = [0, 96], sizes = [8, 32], strides = [1, 1]} : vector<8x128xf32> to vector<8x32xf32>
    %35 = arith.negf %34 : vector<8x32xf32>
    %36 = math.exp %35 : vector<8x32xf32>
    %cst_15 = arith.constant 1.000000e+00 : f32
    %37 = vector.broadcast %cst_15 : f32 to vector<8x32xf32>
    %38 = arith.addf %37, %36 : vector<8x32xf32>
    %39 = arith.divf %37, %38 : vector<8x32xf32>
    %40 = arith.mulf %31, %8 : vector<8x32xf32>
    %41 = arith.mulf %25, %33 : vector<8x32xf32>
    %42 = arith.addf %40, %41 : vector<8x32xf32>
    %43 = math.tanh %42 : vector<8x32xf32>
    %44 = arith.mulf %39, %43 : vector<8x32xf32>
    %c0_16 = arith.constant 0 : index
    %45 = arith.index_cast %c0_i32_8 : i32 to index
    %c0_17 = arith.constant 0 : index
    %46 = vector.load %arg5[%c0_16, %45, %c0_17] : memref<8x8x32xf32, #tpu.memory_space<vmem>>, vector<8x1x32xf32>
    %47 = vector.shape_cast %46 : vector<8x1x32xf32> to vector<8x32xf32>
    %48 = vector.shape_cast %44 : vector<8x32xf32> to vector<8x1x32xf32>
    tpu.vector_store %arg5[%c0_16, %45, %c0_17], %48 {strides = array<i32>} : memref<8x8x32xf32, #tpu.memory_space<vmem>>, vector<8x1x32xf32>,
    %c1_i32 = arith.constant 1 : i32
    %c0_18 = arith.constant 0 : index
    %49 = arith.index_cast %c1_i32 : i32 to index
    %c0_19 = arith.constant 0 : index
    %50 = vector.load %arg1[%c0_18, %49, %c0_19] : memref<8x8x32xbf16, #tpu.memory_space<vmem>>, vector<8x1x32xbf16>
    %51 = vector.shape_cast %50 : vector<8x1x32xbf16> to vector<8x32xbf16>
    %c7_i32_20 = arith.constant 7 : i32
    %52 = arith.subi %c7_i32_20, %c1_i32 : i32
    %c0_21 = arith.constant 0 : index
    %53 = arith.index_cast %52 : i32 to index
    %c0_22 = arith.constant 0 : index
    %54 = vector.load %arg2[%c0_21, %53, %c0_22] : memref<8x8x32xbf16, #tpu.memory_space<vmem>>, vector<8x1x32xbf16>
    %55 = vector.shape_cast %54 : vector<8x1x32xbf16> to vector<8x32xbf16>
    %56 = arith.truncf %44 : vector<8x32xf32> to vector<8x32xbf16>
    %57 = tpu.concatenate %51, %55, %56 in 1 : vector<8x32xbf16>, vector<8x32xbf16>, vector<8x32xbf16> -> vector<8x96xbf16>
    %cst_23 = arith.constant dense<0.000000e+00> : vector<8x128xf32>
    %58 = tpu.matmul %57, %3, %cst_23 {dimension_numbers = #tpu.dot_dimension_numbers<[1], [0], [0], [1], [0, 0, 1, 1], [], []>} : vector<8x96xbf16>, vector<96x128xbf16>, vector<8x128xf32> -> vector<8x128xf32>
    %59 = arith.addf %58, %6 : vector<8x128xf32>
    %60 = vector.extract_strided_slice %59 {offsets = [0, 0], sizes = [8, 32], strides = [1, 1]} : vector<8x128xf32> to vector<8x32xf32>
    %61 = arith.negf %60 : vector<8x32xf32>
    %62 = math.exp %61 : vector<8x32xf32>
    %cst_24 = arith.constant 1.000000e+00 : f32
    %63 = vector.broadcast %cst_24 : f32 to vector<8x32xf32>
    %64 = arith.addf %63, %62 : vector<8x32xf32>
    %65 = arith.divf %63, %64 : vector<8x32xf32>
    %66 = vector.extract_strided_slice %59 {offsets = [0, 32], sizes = [8, 32], strides = [1, 1]} : vector<8x128xf32> to vector<8x32xf32>
    %67 = arith.negf %66 : vector<8x32xf32>
    %68 = math.exp %67 : vector<8x32xf32>
    %cst_25 = arith.constant 1.000000e+00 : f32
    %69 = vector.broadcast %cst_25 : f32 to vector<8x32xf32>
    %70 = arith.addf %69, %68 : vector<8x32xf32>
    %71 = arith.divf %69, %70 : vector<8x32xf32>
    %72 = vector.extract_strided_slice %59 {offsets = [0, 64], sizes = [8, 32], strides = [1, 1]} : vector<8x128xf32> to vector<8x32xf32>
    %73 = math.tanh %72 : vector<8x32xf32>
    %74 = vector.extract_strided_slice %59 {offsets = [0, 96], sizes = [8, 32], strides = [1, 1]} : vector<8x128xf32> to vector<8x32xf32>
    %75 = arith.negf %74 : vector<8x32xf32>
    %76 = math.exp %75 : vector<8x32xf32>
    %cst_26 = arith.constant 1.000000e+00 : f32
    %77 = vector.broadcast %cst_26 : f32 to vector<8x32xf32>
    %78 = arith.addf %77, %76 : vector<8x32xf32>
    %79 = arith.divf %77, %78 : vector<8x32xf32>
    %80 = arith.mulf %71, %42 : vector<8x32xf32>
    %81 = arith.mulf %65, %73 : vector<8x32xf32>
    %82 = arith.addf %80, %81 : vector<8x32xf32>
    %83 = math.tanh %82 : vector<8x32xf32>
    %84 = arith.mulf %79, %83 : vector<8x32xf32>
    %c0_27 = arith.constant 0 : index
    %85 = arith.index_cast %c1_i32 : i32 to index
    %c0_28 = arith.constant 0 : index
    %86 = vector.load %arg5[%c0_27, %85, %c0_28] : memref<8x8x32xf32, #tpu.memory_space<vmem>>, vector<8x1x32xf32>
    %87 = vector.shape_cast %86 : vector<8x1x32xf32> to vector<8x32xf32>
    %88 = vector.shape_cast %84 : vector<8x32xf32> to vector<8x1x32xf32>
    tpu.vector_store %arg5[%c0_27, %85, %c0_28], %88 {strides = array<i32>} : memref<8x8x32xf32, #tpu.memory_space<vmem>>, vector<8x1x32xf32>,
    %c2_i32 = arith.constant 2 : i32
    %c0_29 = arith.constant 0 : index
    %89 = arith.index_cast %c2_i32 : i32 to index
    %c0_30 = arith.constant 0 : index
    %90 = vector.load %arg1[%c0_29, %89, %c0_30] : memref<8x8x32xbf16, #tpu.memory_space<vmem>>, vector<8x1x32xbf16>
    %91 = vector.shape_cast %90 : vector<8x1x32xbf16> to vector<8x32xbf16>
    %c7_i32_31 = arith.constant 7 : i32
    %92 = arith.subi %c7_i32_31, %c2_i32 : i32
    %c0_32 = arith.constant 0 : index
    %93 = arith.index_cast %92 : i32 to index
    %c0_33 = arith.constant 0 : index
    %94 = vector.load %arg2[%c0_32, %93, %c0_33] : memref<8x8x32xbf16, #tpu.memory_space<vmem>>, vector<8x1x32xbf16>
    %95 = vector.shape_cast %94 : vector<8x1x32xbf16> to vector<8x32xbf16>
    %96 = arith.truncf %84 : vector<8x32xf32> to vector<8x32xbf16>
    %97 = tpu.concatenate %91, %95, %96 in 1 : vector<8x32xbf16>, vector<8x32xbf16>, vector<8x32xbf16> -> vector<8x96xbf16>
    %cst_34 = arith.constant dense<0.000000e+00> : vector<8x128xf32>
    %98 = tpu.matmul %97, %3, %cst_34 {dimension_numbers = #tpu.dot_dimension_numbers<[1], [0], [0], [1], [0, 0, 1, 1], [], []>} : vector<8x96xbf16>, vector<96x128xbf16>, vector<8x128xf32> -> vector<8x128xf32>
    %99 = arith.addf %98, %6 : vector<8x128xf32>
    %100 = vector.extract_strided_slice %99 {offsets = [0, 0], sizes = [8, 32], strides = [1, 1]} : vector<8x128xf32> to vector<8x32xf32>
    %101 = arith.negf %100 : vector<8x32xf32>
    %102 = math.exp %101 : vector<8x32xf32>
    %cst_35 = arith.constant 1.000000e+00 : f32
    %103 = vector.broadcast %cst_35 : f32 to vector<8x32xf32>
    %104 = arith.addf %103, %102 : vector<8x32xf32>
    %105 = arith.divf %103, %104 : vector<8x32xf32>
    %106 = vector.extract_strided_slice %99 {offsets = [0, 32], sizes = [8, 32], strides = [1, 1]} : vector<8x128xf32> to vector<8x32xf32>
    %107 = arith.negf %106 : vector<8x32xf32>
    %108 = math.exp %107 : vector<8x32xf32>
    %cst_36 = arith.constant 1.000000e+00 : f32
    %109 = vector.broadcast %cst_36 : f32 to vector<8x32xf32>
    %110 = arith.addf %109, %108 : vector<8x32xf32>
    %111 = arith.divf %109, %110 : vector<8x32xf32>
    %112 = vector.extract_strided_slice %99 {offsets = [0, 64], sizes = [8, 32], strides = [1, 1]} : vector<8x128xf32> to vector<8x32xf32>
    %113 = math.tanh %112 : vector<8x32xf32>
    %114 = vector.extract_strided_slice %99 {offsets = [0, 96], sizes = [8, 32], strides = [1, 1]} : vector<8x128xf32> to vector<8x32xf32>
    %115 = arith.negf %114 : vector<8x32xf32>
    %116 = math.exp %115 : vector<8x32xf32>
    %cst_37 = arith.constant 1.000000e+00 : f32
    %117 = vector.broadcast %cst_37 : f32 to vector<8x32xf32>
    %118 = arith.addf %117, %116 : vector<8x32xf32>
    %119 = arith.divf %117, %118 : vector<8x32xf32>
    %120 = arith.mulf %111, %82 : vector<8x32xf32>
    %121 = arith.mulf %105, %113 : vector<8x32xf32>
    %122 = arith.addf %120, %121 : vector<8x32xf32>
    %123 = math.tanh %122 : vector<8x32xf32>
    %124 = arith.mulf %119, %123 : vector<8x32xf32>
    %c0_38 = arith.constant 0 : index
    %125 = arith.index_cast %c2_i32 : i32 to index
    %c0_39 = arith.constant 0 : index
    %126 = vector.load %arg5[%c0_38, %125, %c0_39] : memref<8x8x32xf32, #tpu.memory_space<vmem>>, vector<8x1x32xf32>
    %127 = vector.shape_cast %126 : vector<8x1x32xf32> to vector<8x32xf32>
    %128 = vector.shape_cast %124 : vector<8x32xf32> to vector<8x1x32xf32>
    tpu.vector_store %arg5[%c0_38, %125, %c0_39], %128 {strides = array<i32>} : memref<8x8x32xf32, #tpu.memory_space<vmem>>, vector<8x1x32xf32>,
    %c3_i32 = arith.constant 3 : i32
    %c0_40 = arith.constant 0 : index
    %129 = arith.index_cast %c3_i32 : i32 to index
    %c0_41 = arith.constant 0 : index
    %130 = vector.load %arg1[%c0_40, %129, %c0_41] : memref<8x8x32xbf16, #tpu.memory_space<vmem>>, vector<8x1x32xbf16>
    %131 = vector.shape_cast %130 : vector<8x1x32xbf16> to vector<8x32xbf16>
    %c7_i32_42 = arith.constant 7 : i32
    %132 = arith.subi %c7_i32_42, %c3_i32 : i32
    %c0_43 = arith.constant 0 : index
    %133 = arith.index_cast %132 : i32 to index
    %c0_44 = arith.constant 0 : index
    %134 = vector.load %arg2[%c0_43, %133, %c0_44] : memref<8x8x32xbf16, #tpu.memory_space<vmem>>, vector<8x1x32xbf16>
    %135 = vector.shape_cast %134 : vector<8x1x32xbf16> to vector<8x32xbf16>
    %136 = arith.truncf %124 : vector<8x32xf32> to vector<8x32xbf16>
    %137 = tpu.concatenate %131, %135, %136 in 1 : vector<8x32xbf16>, vector<8x32xbf16>, vector<8x32xbf16> -> vector<8x96xbf16>
    %cst_45 = arith.constant dense<0.000000e+00> : vector<8x128xf32>
    %138 = tpu.matmul %137, %3, %cst_45 {dimension_numbers = #tpu.dot_dimension_numbers<[1], [0], [0], [1], [0, 0, 1, 1], [], []>} : vector<8x96xbf16>, vector<96x128xbf16>, vector<8x128xf32> -> vector<8x128xf32>
    %139 = arith.addf %138, %6 : vector<8x128xf32>
    %140 = vector.extract_strided_slice %139 {offsets = [0, 0], sizes = [8, 32], strides = [1, 1]} : vector<8x128xf32> to vector<8x32xf32>
    %141 = arith.negf %140 : vector<8x32xf32>
    %142 = math.exp %141 : vector<8x32xf32>
    %cst_46 = arith.constant 1.000000e+00 : f32
    %143 = vector.broadcast %cst_46 : f32 to vector<8x32xf32>
    %144 = arith.addf %143, %142 : vector<8x32xf32>
    %145 = arith.divf %143, %144 : vector<8x32xf32>
    %146 = vector.extract_strided_slice %139 {offsets = [0, 32], sizes = [8, 32], strides = [1, 1]} : vector<8x128xf32> to vector<8x32xf32>
    %147 = arith.negf %146 : vector<8x32xf32>
    %148 = math.exp %147 : vector<8x32xf32>
    %cst_47 = arith.constant 1.000000e+00 : f32
    %149 = vector.broadcast %cst_47 : f32 to vector<8x32xf32>
    %150 = arith.addf %149, %148 : vector<8x32xf32>
    %151 = arith.divf %149, %150 : vector<8x32xf32>
    %152 = vector.extract_strided_slice %139 {offsets = [0, 64], sizes = [8, 32], strides = [1, 1]} : vector<8x128xf32> to vector<8x32xf32>
    %153 = math.tanh %152 : vector<8x32xf32>
    %154 = vector.extract_strided_slice %139 {offsets = [0, 96], sizes = [8, 32], strides = [1, 1]} : vector<8x128xf32> to vector<8x32xf32>
    %155 = arith.negf %154 : vector<8x32xf32>
    %156 = math.exp %155 : vector<8x32xf32>
    %cst_48 = arith.constant 1.000000e+00 : f32
    %157 = vector.broadcast %cst_48 : f32 to vector<8x32xf32>
    %158 = arith.addf %157, %156 : vector<8x32xf32>
    %159 = arith.divf %157, %158 : vector<8x32xf32>
    %160 = arith.mulf %151, %122 : vector<8x32xf32>
    %161 = arith.mulf %145, %153 : vector<8x32xf32>
    %162 = arith.addf %160, %161 : vector<8x32xf32>
    %163 = math.tanh %162 : vector<8x32xf32>
    %164 = arith.mulf %159, %163 : vector<8x32xf32>
    %c0_49 = arith.constant 0 : index
    %165 = arith.index_cast %c3_i32 : i32 to index
    %c0_50 = arith.constant 0 : index
    %166 = vector.load %arg5[%c0_49, %165, %c0_50] : memref<8x8x32xf32, #tpu.memory_space<vmem>>, vector<8x1x32xf32>
    %167 = vector.shape_cast %166 : vector<8x1x32xf32> to vector<8x32xf32>
    %168 = vector.shape_cast %164 : vector<8x32xf32> to vector<8x1x32xf32>
    tpu.vector_store %arg5[%c0_49, %165, %c0_50], %168 {strides = array<i32>} : memref<8x8x32xf32, #tpu.memory_space<vmem>>, vector<8x1x32xf32>,
    %c4_i32 = arith.constant 4 : i32
    %c0_51 = arith.constant 0 : index
    %169 = arith.index_cast %c4_i32 : i32 to index
    %c0_52 = arith.constant 0 : index
    %170 = vector.load %arg1[%c0_51, %169, %c0_52] : memref<8x8x32xbf16, #tpu.memory_space<vmem>>, vector<8x1x32xbf16>
    %171 = vector.shape_cast %170 : vector<8x1x32xbf16> to vector<8x32xbf16>
    %c7_i32_53 = arith.constant 7 : i32
    %172 = arith.subi %c7_i32_53, %c4_i32 : i32
    %c0_54 = arith.constant 0 : index
    %173 = arith.index_cast %172 : i32 to index
    %c0_55 = arith.constant 0 : index
    %174 = vector.load %arg2[%c0_54, %173, %c0_55] : memref<8x8x32xbf16, #tpu.memory_space<vmem>>, vector<8x1x32xbf16>
    %175 = vector.shape_cast %174 : vector<8x1x32xbf16> to vector<8x32xbf16>
    %176 = arith.truncf %164 : vector<8x32xf32> to vector<8x32xbf16>
    %177 = tpu.concatenate %171, %175, %176 in 1 : vector<8x32xbf16>, vector<8x32xbf16>, vector<8x32xbf16> -> vector<8x96xbf16>
    %cst_56 = arith.constant dense<0.000000e+00> : vector<8x128xf32>
    %178 = tpu.matmul %177, %3, %cst_56 {dimension_numbers = #tpu.dot_dimension_numbers<[1], [0], [0], [1], [0, 0, 1, 1], [], []>} : vector<8x96xbf16>, vector<96x128xbf16>, vector<8x128xf32> -> vector<8x128xf32>
    %179 = arith.addf %178, %6 : vector<8x128xf32>
    %180 = vector.extract_strided_slice %179 {offsets = [0, 0], sizes = [8, 32], strides = [1, 1]} : vector<8x128xf32> to vector<8x32xf32>
    %181 = arith.negf %180 : vector<8x32xf32>
    %182 = math.exp %181 : vector<8x32xf32>
    %cst_57 = arith.constant 1.000000e+00 : f32
    %183 = vector.broadcast %cst_57 : f32 to vector<8x32xf32>
    %184 = arith.addf %183, %182 : vector<8x32xf32>
    %185 = arith.divf %183, %184 : vector<8x32xf32>
    %186 = vector.extract_strided_slice %179 {offsets = [0, 32], sizes = [8, 32], strides = [1, 1]} : vector<8x128xf32> to vector<8x32xf32>
    %187 = arith.negf %186 : vector<8x32xf32>
    %188 = math.exp %187 : vector<8x32xf32>
    %cst_58 = arith.constant 1.000000e+00 : f32
    %189 = vector.broadcast %cst_58 : f32 to vector<8x32xf32>
    %190 = arith.addf %189, %188 : vector<8x32xf32>
    %191 = arith.divf %189, %190 : vector<8x32xf32>
    %192 = vector.extract_strided_slice %179 {offsets = [0, 64], sizes = [8, 32], strides = [1, 1]} : vector<8x128xf32> to vector<8x32xf32>
    %193 = math.tanh %192 : vector<8x32xf32>
    %194 = vector.extract_strided_slice %179 {offsets = [0, 96], sizes = [8, 32], strides = [1, 1]} : vector<8x128xf32> to vector<8x32xf32>
    %195 = arith.negf %194 : vector<8x32xf32>
    %196 = math.exp %195 : vector<8x32xf32>
    %cst_59 = arith.constant 1.000000e+00 : f32
    %197 = vector.broadcast %cst_59 : f32 to vector<8x32xf32>
    %198 = arith.addf %197, %196 : vector<8x32xf32>
    %199 = arith.divf %197, %198 : vector<8x32xf32>
    %200 = arith.mulf %191, %162 : vector<8x32xf32>
    %201 = arith.mulf %185, %193 : vector<8x32xf32>
    %202 = arith.addf %200, %201 : vector<8x32xf32>
    %203 = math.tanh %202 : vector<8x32xf32>
    %204 = arith.mulf %199, %203 : vector<8x32xf32>
    %c0_60 = arith.constant 0 : index
    %205 = arith.index_cast %c4_i32 : i32 to index
    %c0_61 = arith.constant 0 : index
    %206 = vector.load %arg5[%c0_60, %205, %c0_61] : memref<8x8x32xf32, #tpu.memory_space<vmem>>, vector<8x1x32xf32>
    %207 = vector.shape_cast %206 : vector<8x1x32xf32> to vector<8x32xf32>
    %208 = vector.shape_cast %204 : vector<8x32xf32> to vector<8x1x32xf32>
    tpu.vector_store %arg5[%c0_60, %205, %c0_61], %208 {strides = array<i32>} : memref<8x8x32xf32, #tpu.memory_space<vmem>>, vector<8x1x32xf32>,
    %c5_i32 = arith.constant 5 : i32
    %c0_62 = arith.constant 0 : index
    %209 = arith.index_cast %c5_i32 : i32 to index
    %c0_63 = arith.constant 0 : index
    %210 = vector.load %arg1[%c0_62, %209, %c0_63] : memref<8x8x32xbf16, #tpu.memory_space<vmem>>, vector<8x1x32xbf16>
    %211 = vector.shape_cast %210 : vector<8x1x32xbf16> to vector<8x32xbf16>
    %c7_i32_64 = arith.constant 7 : i32
    %212 = arith.subi %c7_i32_64, %c5_i32 : i32
    %c0_65 = arith.constant 0 : index
    %213 = arith.index_cast %212 : i32 to index
    %c0_66 = arith.constant 0 : index
    %214 = vector.load %arg2[%c0_65, %213, %c0_66] : memref<8x8x32xbf16, #tpu.memory_space<vmem>>, vector<8x1x32xbf16>
    %215 = vector.shape_cast %214 : vector<8x1x32xbf16> to vector<8x32xbf16>
    %216 = arith.truncf %204 : vector<8x32xf32> to vector<8x32xbf16>
    %217 = tpu.concatenate %211, %215, %216 in 1 : vector<8x32xbf16>, vector<8x32xbf16>, vector<8x32xbf16> -> vector<8x96xbf16>
    %cst_67 = arith.constant dense<0.000000e+00> : vector<8x128xf32>
    %218 = tpu.matmul %217, %3, %cst_67 {dimension_numbers = #tpu.dot_dimension_numbers<[1], [0], [0], [1], [0, 0, 1, 1], [], []>} : vector<8x96xbf16>, vector<96x128xbf16>, vector<8x128xf32> -> vector<8x128xf32>
    %219 = arith.addf %218, %6 : vector<8x128xf32>
    %220 = vector.extract_strided_slice %219 {offsets = [0, 0], sizes = [8, 32], strides = [1, 1]} : vector<8x128xf32> to vector<8x32xf32>
    %221 = arith.negf %220 : vector<8x32xf32>
    %222 = math.exp %221 : vector<8x32xf32>
    %cst_68 = arith.constant 1.000000e+00 : f32
    %223 = vector.broadcast %cst_68 : f32 to vector<8x32xf32>
    %224 = arith.addf %223, %222 : vector<8x32xf32>
    %225 = arith.divf %223, %224 : vector<8x32xf32>
    %226 = vector.extract_strided_slice %219 {offsets = [0, 32], sizes = [8, 32], strides = [1, 1]} : vector<8x128xf32> to vector<8x32xf32>
    %227 = arith.negf %226 : vector<8x32xf32>
    %228 = math.exp %227 : vector<8x32xf32>
    %cst_69 = arith.constant 1.000000e+00 : f32
    %229 = vector.broadcast %cst_69 : f32 to vector<8x32xf32>
    %230 = arith.addf %229, %228 : vector<8x32xf32>
    %231 = arith.divf %229, %230 : vector<8x32xf32>
    %232 = vector.extract_strided_slice %219 {offsets = [0, 64], sizes = [8, 32], strides = [1, 1]} : vector<8x128xf32> to vector<8x32xf32>
    %233 = math.tanh %232 : vector<8x32xf32>
    %234 = vector.extract_strided_slice %219 {offsets = [0, 96], sizes = [8, 32], strides = [1, 1]} : vector<8x128xf32> to vector<8x32xf32>
    %235 = arith.negf %234 : vector<8x32xf32>
    %236 = math.exp %235 : vector<8x32xf32>
    %cst_70 = arith.constant 1.000000e+00 : f32
    %237 = vector.broadcast %cst_70 : f32 to vector<8x32xf32>
    %238 = arith.addf %237, %236 : vector<8x32xf32>
    %239 = arith.divf %237, %238 : vector<8x32xf32>
    %240 = arith.mulf %231, %202 : vector<8x32xf32>
    %241 = arith.mulf %225, %233 : vector<8x32xf32>
    %242 = arith.addf %240, %241 : vector<8x32xf32>
    %243 = math.tanh %242 : vector<8x32xf32>
    %244 = arith.mulf %239, %243 : vector<8x32xf32>
    %c0_71 = arith.constant 0 : index
    %245 = arith.index_cast %c5_i32 : i32 to index
    %c0_72 = arith.constant 0 : index
    %246 = vector.load %arg5[%c0_71, %245, %c0_72] : memref<8x8x32xf32, #tpu.memory_space<vmem>>, vector<8x1x32xf32>
    %247 = vector.shape_cast %246 : vector<8x1x32xf32> to vector<8x32xf32>
    %248 = vector.shape_cast %244 : vector<8x32xf32> to vector<8x1x32xf32>
    tpu.vector_store %arg5[%c0_71, %245, %c0_72], %248 {strides = array<i32>} : memref<8x8x32xf32, #tpu.memory_space<vmem>>, vector<8x1x32xf32>,
    %c6_i32 = arith.constant 6 : i32
    %c0_73 = arith.constant 0 : index
    %249 = arith.index_cast %c6_i32 : i32 to index
    %c0_74 = arith.constant 0 : index
    %250 = vector.load %arg1[%c0_73, %249, %c0_74] : memref<8x8x32xbf16, #tpu.memory_space<vmem>>, vector<8x1x32xbf16>
    %251 = vector.shape_cast %250 : vector<8x1x32xbf16> to vector<8x32xbf16>
    %c7_i32_75 = arith.constant 7 : i32
    %252 = arith.subi %c7_i32_75, %c6_i32 : i32
    %c0_76 = arith.constant 0 : index
    %253 = arith.index_cast %252 : i32 to index
    %c0_77 = arith.constant 0 : index
    %254 = vector.load %arg2[%c0_76, %253, %c0_77] : memref<8x8x32xbf16, #tpu.memory_space<vmem>>, vector<8x1x32xbf16>
    %255 = vector.shape_cast %254 : vector<8x1x32xbf16> to vector<8x32xbf16>
    %256 = arith.truncf %244 : vector<8x32xf32> to vector<8x32xbf16>
    %257 = tpu.concatenate %251, %255, %256 in 1 : vector<8x32xbf16>, vector<8x32xbf16>, vector<8x32xbf16> -> vector<8x96xbf16>
    %cst_78 = arith.constant dense<0.000000e+00> : vector<8x128xf32>
    %258 = tpu.matmul %257, %3, %cst_78 {dimension_numbers = #tpu.dot_dimension_numbers<[1], [0], [0], [1], [0, 0, 1, 1], [], []>} : vector<8x96xbf16>, vector<96x128xbf16>, vector<8x128xf32> -> vector<8x128xf32>
    %259 = arith.addf %258, %6 : vector<8x128xf32>
    %260 = vector.extract_strided_slice %259 {offsets = [0, 0], sizes = [8, 32], strides = [1, 1]} : vector<8x128xf32> to vector<8x32xf32>
    %261 = arith.negf %260 : vector<8x32xf32>
    %262 = math.exp %261 : vector<8x32xf32>
    %cst_79 = arith.constant 1.000000e+00 : f32
    %263 = vector.broadcast %cst_79 : f32 to vector<8x32xf32>
    %264 = arith.addf %263, %262 : vector<8x32xf32>
    %265 = arith.divf %263, %264 : vector<8x32xf32>
    %266 = vector.extract_strided_slice %259 {offsets = [0, 32], sizes = [8, 32], strides = [1, 1]} : vector<8x128xf32> to vector<8x32xf32>
    %267 = arith.negf %266 : vector<8x32xf32>
    %268 = math.exp %267 : vector<8x32xf32>
    %cst_80 = arith.constant 1.000000e+00 : f32
    %269 = vector.broadcast %cst_80 : f32 to vector<8x32xf32>
    %270 = arith.addf %269, %268 : vector<8x32xf32>
    %271 = arith.divf %269, %270 : vector<8x32xf32>
    %272 = vector.extract_strided_slice %259 {offsets = [0, 64], sizes = [8, 32], strides = [1, 1]} : vector<8x128xf32> to vector<8x32xf32>
    %273 = math.tanh %272 : vector<8x32xf32>
    %274 = vector.extract_strided_slice %259 {offsets = [0, 96], sizes = [8, 32], strides = [1, 1]} : vector<8x128xf32> to vector<8x32xf32>
    %275 = arith.negf %274 : vector<8x32xf32>
    %276 = math.exp %275 : vector<8x32xf32>
    %cst_81 = arith.constant 1.000000e+00 : f32
    %277 = vector.broadcast %cst_81 : f32 to vector<8x32xf32>
    %278 = arith.addf %277, %276 : vector<8x32xf32>
    %279 = arith.divf %277, %278 : vector<8x32xf32>
    %280 = arith.mulf %271, %242 : vector<8x32xf32>
    %281 = arith.mulf %265, %273 : vector<8x32xf32>
    %282 = arith.addf %280, %281 : vector<8x32xf32>
    %283 = math.tanh %282 : vector<8x32xf32>
    %284 = arith.mulf %279, %283 : vector<8x32xf32>
    %c0_82 = arith.constant 0 : index
    %285 = arith.index_cast %c6_i32 : i32 to index
    %c0_83 = arith.constant 0 : index
    %286 = vector.load %arg5[%c0_82, %285, %c0_83] : memref<8x8x32xf32, #tpu.memory_space<vmem>>, vector<8x1x32xf32>
    %287 = vector.shape_cast %286 : vector<8x1x32xf32> to vector<8x32xf32>
    %288 = vector.shape_cast %284 : vector<8x32xf32> to vector<8x1x32xf32>
    tpu.vector_store %arg5[%c0_82, %285, %c0_83], %288 {strides = array<i32>} : memref<8x8x32xf32, #tpu.memory_space<vmem>>, vector<8x1x32xf32>,
    %c7_i32_84 = arith.constant 7 : i32
    %c0_85 = arith.constant 0 : index
    %289 = arith.index_cast %c7_i32_84 : i32 to index
    %c0_86 = arith.constant 0 : index
    %290 = vector.load %arg1[%c0_85, %289, %c0_86] : memref<8x8x32xbf16, #tpu.memory_space<vmem>>, vector<8x1x32xbf16>
    %291 = vector.shape_cast %290 : vector<8x1x32xbf16> to vector<8x32xbf16>
    %c7_i32_87 = arith.constant 7 : i32
    %292 = arith.subi %c7_i32_87, %c7_i32_84 : i32
    %c0_88 = arith.constant 0 : index
    %293 = arith.index_cast %292 : i32 to index
    %c0_89 = arith.constant 0 : index
    %294 = vector.load %arg2[%c0_88, %293, %c0_89] : memref<8x8x32xbf16, #tpu.memory_space<vmem>>, vector<8x1x32xbf16>
    %295 = vector.shape_cast %294 : vector<8x1x32xbf16> to vector<8x32xbf16>
    %296 = arith.truncf %284 : vector<8x32xf32> to vector<8x32xbf16>
    %297 = tpu.concatenate %291, %295, %296 in 1 : vector<8x32xbf16>, vector<8x32xbf16>, vector<8x32xbf16> -> vector<8x96xbf16>
    %cst_90 = arith.constant dense<0.000000e+00> : vector<8x128xf32>
    %298 = tpu.matmul %297, %3, %cst_90 {dimension_numbers = #tpu.dot_dimension_numbers<[1], [0], [0], [1], [0, 0, 1, 1], [], []>} : vector<8x96xbf16>, vector<96x128xbf16>, vector<8x128xf32> -> vector<8x128xf32>
    %299 = arith.addf %298, %6 : vector<8x128xf32>
    %300 = vector.extract_strided_slice %299 {offsets = [0, 0], sizes = [8, 32], strides = [1, 1]} : vector<8x128xf32> to vector<8x32xf32>
    %301 = arith.negf %300 : vector<8x32xf32>
    %302 = math.exp %301 : vector<8x32xf32>
    %cst_91 = arith.constant 1.000000e+00 : f32
    %303 = vector.broadcast %cst_91 : f32 to vector<8x32xf32>
    %304 = arith.addf %303, %302 : vector<8x32xf32>
    %305 = arith.divf %303, %304 : vector<8x32xf32>
    %306 = vector.extract_strided_slice %299 {offsets = [0, 32], sizes = [8, 32], strides = [1, 1]} : vector<8x128xf32> to vector<8x32xf32>
    %307 = arith.negf %306 : vector<8x32xf32>
    %308 = math.exp %307 : vector<8x32xf32>
    %cst_92 = arith.constant 1.000000e+00 : f32
    %309 = vector.broadcast %cst_92 : f32 to vector<8x32xf32>
    %310 = arith.addf %309, %308 : vector<8x32xf32>
    %311 = arith.divf %309, %310 : vector<8x32xf32>
    %312 = vector.extract_strided_slice %299 {offsets = [0, 64], sizes = [8, 32], strides = [1, 1]} : vector<8x128xf32> to vector<8x32xf32>
    %313 = math.tanh %312 : vector<8x32xf32>
    %314 = vector.extract_strided_slice %299 {offsets = [0, 96], sizes = [8, 32], strides = [1, 1]} : vector<8x128xf32> to vector<8x32xf32>
    %315 = arith.negf %314 : vector<8x32xf32>
    %316 = math.exp %315 : vector<8x32xf32>
    %cst_93 = arith.constant 1.000000e+00 : f32
    %317 = vector.broadcast %cst_93 : f32 to vector<8x32xf32>
    %318 = arith.addf %317, %316 : vector<8x32xf32>
    %319 = arith.divf %317, %318 : vector<8x32xf32>
    %320 = arith.mulf %311, %282 : vector<8x32xf32>
    %321 = arith.mulf %305, %313 : vector<8x32xf32>
    %322 = arith.addf %320, %321 : vector<8x32xf32>
    %323 = math.tanh %322 : vector<8x32xf32>
    %324 = arith.mulf %319, %323 : vector<8x32xf32>
    %c0_94 = arith.constant 0 : index
    %325 = arith.index_cast %c7_i32_84 : i32 to index
    %c0_95 = arith.constant 0 : index
    %326 = vector.load %arg5[%c0_94, %325, %c0_95] : memref<8x8x32xf32, #tpu.memory_space<vmem>>, vector<8x1x32xf32>
    %327 = vector.shape_cast %326 : vector<8x1x32xf32> to vector<8x32xf32>
    %328 = vector.shape_cast %324 : vector<8x32xf32> to vector<8x1x32xf32>
    tpu.vector_store %arg5[%c0_94, %325, %c0_95], %328 {strides = array<i32>} : memref<8x8x32xf32, #tpu.memory_space<vmem>>, vector<8x1x32xf32>,
    %c8_i32 = arith.constant 8 : i32
    %c0_96 = arith.constant 0 : index
    %c0_97 = arith.constant 0 : index
    %329 = vector.load %arg6[%c0_96, %c0_97] : memref<8x32xf32, #tpu.memory_space<vmem>>, vector<8x32xf32>
    tpu.vector_store %arg6[%c0_96, %c0_97], %324 {strides = array<i32>} : memref<8x32xf32, #tpu.memory_space<vmem>>, vector<8x32xf32>,
    %c0_98 = arith.constant 0 : index
    %c0_99 = arith.constant 0 : index
    %330 = vector.load %arg7[%c0_98, %c0_99] : memref<8x32xf32, #tpu.memory_space<vmem>>, vector<8x32xf32>
    tpu.vector_store %arg7[%c0_98, %c0_99], %322 {strides = array<i32>} : memref<8x32xf32, #tpu.memory_space<vmem>>, vector<8x32xf32>,
    return
  }
  func.func @transform_0(%arg0: i32) -> (i32, i32, i32) {
    %c0_i32 = arith.constant 0 : i32
    %c0_i32_0 = arith.constant 0 : i32
    %c0_i32_1 = arith.constant 0 : i32
    return %c0_i32, %arg0, %c0_i32_0 : i32, i32, i32
  }
  func.func @transform_1(%arg0: i32) -> (i32, i32, i32) {
    %c0_i32 = arith.constant 0 : i32
    %0 = arith.subi %c0_i32, %arg0 : i32
    %c0_i32_0 = arith.constant 0 : i32
    %c0_i32_1 = arith.constant 0 : i32
    %c0_i32_2 = arith.constant 0 : i32
    return %c0_i32_0, %0, %c0_i32_1 : i32, i32, i32
  }
  func.func @transform_2(%arg0: i32) -> (i32, i32) {
    %c0_i32 = arith.constant 0 : i32
    %c0_i32_0 = arith.constant 0 : i32
    %c0_i32_1 = arith.constant 0 : i32
    return %c0_i32, %c0_i32_0 : i32, i32
  }
  func.func @transform_3(%arg0: i32) -> (i32, i32) {
    %c0_i32 = arith.constant 0 : i32
    %c0_i32_0 = arith.constant 0 : i32
    %c0_i32_1 = arith.constant 0 : i32
    return %c0_i32, %c0_i32_0 : i32, i32
  }
  func.func @transform_4(%arg0: i32) -> (i32, i32, i32) {
    %c0_i32 = arith.constant 0 : i32
    %c0_i32_0 = arith.constant 0 : i32
    %c0_i32_1 = arith.constant 0 : i32
    return %c0_i32, %arg0, %c0_i32_0 : i32, i32, i32
  }
}

</mosaic_0001>

<llo_original>
// kernel: bilstm_forward.1
$region0: #{bilstm_forward.1}
  #allocation0 [shape = 'u32[]', space=smem, size = 0x4, offset = 0x4, fixed_abs, tag = 'smem constant byte address 0x4 - core index']
  #allocation1 [shape = 'u32[144,128]{1,0:T(1,128)}', space=vmem, size = 0x12000, scoped, tag = 'internal scratch']
  #allocation2 [shape = 'f32[8,32]{1,0:T(8,128)}', space=vmem, size = 0x1000, scoped, tag = 'scratch operand']
  #allocation3 [shape = 'f32[8,32]{1,0:T(8,128)}', space=vmem, size = 0x1000, scoped, tag = 'scratch operand']
  %s0 = inlined_call_operand.vmem [shape: bf16[8,8,32], index: 0, kind: input, shape index: {}, may-alias: {0,1}]
  %s1 = inlined_call_operand.vmem [shape: bf16[8,8,32], index: 1, kind: input, shape index: {}, may-alias: {0,1}]
  %s2 = inlined_call_operand.vmem [shape: bf16[96,128], index: 2, kind: input, shape index: {}]
  %s3 = inlined_call_operand.vmem [shape: f32[1,128], index: 3, kind: input, shape index: {}]
  %s4 = inlined_call_operand.vmem [shape: f32[8,8,32], index: 4, kind: output, shape index: {}]
  %s5 = sld [smem:[#allocation0]]
  $region30: #{bilstm_forward.1} parent=0
    _
  %s7 = ssub.s32 1, %s5
  %s8 = scalar_select 0, %s7, %s5
  // Predicated region
  $region2: #{bilstm_forward.1} parent=0 // pred_check
    _
  $region3: #{bilstm_forward.1} parent=0 // pred_check_branch
    %10 = sbr.rel (0) target = $region5
  $region4: #{bilstm_forward.1} parent=0 // pred_region
    _
  $region5: #{bilstm_forward.1} parent=0 // pred_fallthru
    _
  // Predicated region
  $region6: #{bilstm_forward.1} parent=0 // pred_check
    _
  $region7: #{bilstm_forward.1} parent=0 // pred_check_branch
    %12 = sbr.rel (0) target = $region9
  $region8: #{bilstm_forward.1} parent=0 // pred_region
    %s13 = ssub.s32 0, 0
    %p14 = scmp.lt.s32.totalorder %s13, 0
    %s15 = scalar_select %p14, %s13, 0
    %s16 = smul.addr %s15, 4
    %s17 = scalar_lea.vmem %s1, %s16
    %s18 = ssub.s32 0, 0
  $region9: #{bilstm_forward.1} parent=0 // pred_fallthru
    _
  // Predicated region
  $region10: #{bilstm_forward.1} parent=0 // pred_check
    _
  $region11: #{bilstm_forward.1} parent=0 // pred_check_branch
    %20 = sbr.rel (0) target = $region13
  $region12: #{bilstm_forward.1} parent=0 // pred_region
    _
  $region13: #{bilstm_forward.1} parent=0 // pred_fallthru
    _
  // Predicated region
  $region14: #{bilstm_forward.1} parent=0 // pred_check
    _
  $region15: #{bilstm_forward.1} parent=0 // pred_check_branch
    %22 = sbr.rel (0) target = $region17
  $region16: #{bilstm_forward.1} parent=0 // pred_region
    _
  $region17: #{bilstm_forward.1} parent=0 // pred_fallthru
    _
  %s23 = ssub.s32 0, 0
  %p24 = scmp.lt.s32.totalorder %s23, 0
  %s25 = scalar_select %p24, %s23, 0
  %s26 = smul.addr %s25, 4
  %s27 = scalar_lea.vmem %s1, %s26
  %s28 = ssub.s32 0, 0
  %p29 = scmp.lt.s32.totalorder %s28, 0
  %s30 = scalar_select %p29, %s28, 0
  %s31 = smul.addr %s30, 4
  %s32 = scalar_lea.vmem %s1, %s31
  %s33 = ssub.s32 0, 0
  %p35 = scmp.eq.s32.totalorder 0, 0
  // Predicated region
  $region18: #{bilstm_forward.1} parent=0 // pred_check
    %p36 = pneg %p35
  $region19: #{bilstm_forward.1} parent=0 // pred_check_branch
    %38 = sbr.rel (%p36) target = $region21
  $region20: #{bilstm_forward.1} parent=0 // pred_region
    %vm39 = vcmask 261120
    %40 = vst.msk [vmem:[#allocation2] sm:$0xff] %vm39, 0.0
    %41 = vst.msk [vmem:[#allocation3] sm:$0xff] %vm39, 0.0
  $region21: #{bilstm_forward.1} parent=0 // pred_fallthru
    _
  %v42 = vld [vmem:[%s2] sm:$0xf]
  %v43 = vld [vmem:[%s2 + $0x4] sm:$0xf]
  %v44 = vld [vmem:[%s2 + $0x8] sm:$0xf]
  %v45 = vld [vmem:[%s2 + $0xc] sm:$0xf]
  %v46 = vld [vmem:[%s2 + $0x10] sm:$0xf]
  %v47 = vld [vmem:[%s2 + $0x14] sm:$0xf]
  %v48 = vld [vmem:[%s2 + $0x18] sm:$0xf]
  %v49 = vld [vmem:[%s2 + $0x1c] sm:$0xf]
  %v50 = vld [vmem:[%s2 + $0x20] sm:$0xf]
  %v51 = vld [vmem:[%s2 + $0x24] sm:$0xf]
  %v52 = vld [vmem:[%s2 + $0x28] sm:$0xf]
  %v53 = vld [vmem:[%s2 + $0x2c] sm:$0xf]
  %v54 = vld [vmem:[%s3] sm:$0x1]
  %v56 = vlaneseq
  %v57 = vshrl.u32 %v56, 7
  %v58 = vsub.s32 0, %v57
  %v59 = vrot.slane %v54, %v58
  %v61 = vld [vmem:[#allocation2] sm:$0xff]
  %v62 = vld [vmem:[#allocation3] sm:$0xff]
  %v63 = vld [vmem:[%s0] sm:$0x1]
  %v64 = vld [vmem:[%s0 + $0x4] sm:$0x1]
  %v65 = vld [vmem:[%s0 + $0x8] sm:$0x1]
  %v66 = vld [vmem:[%s0 + $0xc] sm:$0x1]
  %v67 = vld [vmem:[%s0 + $0x10] sm:$0x1]
  %v68 = vld [vmem:[%s0 + $0x14] sm:$0x1]
  %v69 = vld [vmem:[%s0 + $0x18] sm:$0x1]
  %v70 = vld [vmem:[%s0 + $0x1c] sm:$0x1]
  %v71 = vld [vmem:[%s32] sm:$0x8]
  %v72 = vld [vmem:[%s32 + $0x4] sm:$0x8]
  %v73 = vld [vmem:[%s32 + $0x8] sm:$0x8]
  %v74 = vld [vmem:[%s32 + $0xc] sm:$0x8]
  %v75 = vld [vmem:[%s32 + $0x10] sm:$0x8]
  %v76 = vld [vmem:[%s32 + $0x14] sm:$0x8]
  %v77 = vld [vmem:[%s32 + $0x18] sm:$0x8]
  %v78 = vld [vmem:[%s32 + $0x1c] sm:$0x8]
  %v79 = vpack.c.bf16 %v61, %v61
  %v88 = vunpack.c.l.b16 %v63
  %v89 = vunpack.c.l.b16 %v64
  %v90 = vunpack.c.l.b16 %v65
  %v91 = vunpack.c.l.b16 %v66
  %v92 = vunpack.c.l.b16 %v67
  %v93 = vunpack.c.l.b16 %v68
  %v94 = vunpack.c.l.b16 %v69
  %v95 = vunpack.c.l.b16 %v70
  %v96 = vpack.c.b16 %v88, %v88
  %v97 = vpack.c.b16 %v89, %v89
  %v98 = vpack.c.b16 %v90, %v90
  %v99 = vpack.c.b16 %v91, %v91
  %v100 = vpack.c.b16 %v92, %v92
  %v101 = vpack.c.b16 %v93, %v93
  %v102 = vpack.c.b16 %v94, %v94
  %v103 = vpack.c.b16 %v95, %v95
  %v104 = vunpack.c.l.b16 %v96
  %v105 = vunpack.c.l.b16 %v97
  %v106 = vunpack.c.l.b16 %v98
  %v107 = vunpack.c.l.b16 %v99
  %v108 = vunpack.c.l.b16 %v100
  %v109 = vunpack.c.l.b16 %v101
  %v110 = vunpack.c.l.b16 %v102
  %v111 = vunpack.c.l.b16 %v103
  %v112 = vrot.slane %v105, 7
  %vm113 = vcmask 1041409
  %v114 = vsel %vm113, %v112, %v104
  %v115 = vrot.slane %v106, 6
  %vm116 = vcmask 1042434
  %v117 = vsel %vm116, %v115, %v114
  %v118 = vrot.slane %v107, 5
  %vm119 = vcmask 1043459
  %v120 = vsel %vm119, %v118, %v117
  %v121 = vrot.slane %v108, 4
  %vm122 = vcmask 1044484
  %v123 = vsel %vm122, %v121, %v120
  %v124 = vrot.slane %v109, 3
  %vm125 = vcmask 1045509
  %v126 = vsel %vm125, %v124, %v123
  %v127 = vrot.slane %v110, 2
  %vm128 = vcmask 1046534
  %v129 = vsel %vm128, %v127, %v126
  %v130 = vrot.slane %v111, 1
  %vm131 = vcmask 1047559
  %v132 = vsel %vm131, %v130, %v129
  %v133 = vpack.c.b16 %v132, %v132
  %v142 = vunpack.c.l.b16 %v71
  %v143 = vunpack.c.l.b16 %v72
  %v144 = vunpack.c.l.b16 %v73
  %v145 = vunpack.c.l.b16 %v74
  %v146 = vunpack.c.l.b16 %v75
  %v147 = vunpack.c.l.b16 %v76
  %v148 = vunpack.c.l.b16 %v77
  %v149 = vunpack.c.l.b16 %v78
  %v150 = vpack.c.b16 %v142, %v142
  %v151 = vpack.c.b16 %v143, %v143
  %v152 = vpack.c.b16 %v144, %v144
  %v153 = vpack.c.b16 %v145, %v145
  %v154 = vpack.c.b16 %v146, %v146
  %v155 = vpack.c.b16 %v147, %v147
  %v156 = vpack.c.b16 %v148, %v148
  %v157 = vpack.c.b16 %v149, %v149
  %v158 = vunpack.c.l.b16 %v150
  %v159 = vunpack.c.l.b16 %v151
  %v160 = vunpack.c.l.b16 %v152
  %v161 = vunpack.c.l.b16 %v153
  %v162 = vunpack.c.l.b16 %v154
  %v163 = vunpack.c.l.b16 %v155
  %v164 = vunpack.c.l.b16 %v156
  %v165 = vunpack.c.l.b16 %v157
  %v166 = vrot.slane %v158, 7
  %v167 = vrot.slane %v159, 6
  %v168 = vsel %vm113, %v167, %v166
  %v169 = vrot.slane %v160, 5
  %v170 = vsel %vm116, %v169, %v168
  %v171 = vrot.slane %v161, 4
  %v172 = vsel %vm119, %v171, %v170
  %v173 = vrot.slane %v162, 3
  %v174 = vsel %vm122, %v173, %v172
  %v175 = vrot.slane %v163, 2
  %v176 = vsel %vm125, %v175, %v174
  %v177 = vrot.slane %v164, 1
  %v178 = vsel %vm128, %v177, %v176
  %v179 = vsel %vm131, %v165, %v178
  %v180 = vpack.c.b16 %v179, %v179
  %181 = vrot.lane.b32.xlu0 %v180, 32
  %v182 = vpop.permute.xlu0 %181
  %184 = vrot.lane.b32.xlu0 %v79, 64
  %v185 = vpop.permute.xlu0 %184
  %vm186 = vcmask 261120
  %v189 = vsel %vm186, %v133, %v182
  %vm190 = vcmask 523264
  %v192 = vsel %vm190, %v189, %v185
  %v205 = vunpack.c.l.b16 %v42
  %v206 = vunpack.c.l.b16 %v43
  %v207 = vunpack.c.l.b16 %v44
  %v208 = vunpack.c.l.b16 %v45
  %v209 = vunpack.c.l.b16 %v46
  %v210 = vunpack.c.l.b16 %v47
  %v211 = vunpack.c.l.b16 %v48
  %v212 = vunpack.c.l.b16 %v49
  %v213 = vunpack.c.l.b16 %v50
  %v214 = vunpack.c.l.b16 %v51
  %v215 = vunpack.c.l.b16 %v52
  %v216 = vunpack.c.l.b16 %v53
  %v217 = vpack.c.b16 %v206, %v205
  %v218 = vpack.c.b16 %v208, %v207
  %v219 = vpack.c.b16 %v210, %v209
  %v220 = vpack.c.b16 %v212, %v211
  %v221 = vpack.c.b16 %v214, %v213
  %v222 = vpack.c.b16 %v216, %v215
  %vm229 = vcmask 785408
  %v230 = vsel %vm229, %v192, 0
  %232 = vmatprep.subr.bf16.mxu0 0
  %233 = vmatpush1.bf16.msra.mxu0 0
  %234 = vmatprep.subr.bf16.mxu0 0
  %235 = vmatpush1.bf16.msra.mxu0 0
  %236 = vmatprep.subr.bf16.mxu0 0
  %237 = vmatpush1.bf16.msra.mxu0 %v222
  %238 = vmatprep.subr.bf16.mxu0 0
  %239 = vmatpush1.bf16.msra.mxu0 %v221
  %240 = vmatprep.subr.bf16.mxu0 0
  %241 = vmatpush1.bf16.msra.mxu0 %v220
  %242 = vmatprep.subr.bf16.mxu0 0
  %243 = vmatpush1.bf16.msra.mxu0 %v219
  %244 = vmatprep.subr.bf16.mxu0 0
  %245 = vmatpush1.bf16.msra.mxu0 %v218
  %246 = vmatprep.subr.bf16.mxu0 0
  %247 = vmatpush1.bf16.msra.mxu0 %v217
  %248 = vmatprep.subr.bf16.mxu0 0
  %249 = vmatpush2.bf16.msra.mxu0 0
  %250 = vmatprep.subr.bf16.mxu0 0
  %251 = vmatpush2.bf16.msra.mxu0 0
  %252 = vmatprep.subr.bf16.mxu0 0
  %253 = vmatpush2.bf16.msra.mxu0 0
  %254 = vmatprep.subr.bf16.mxu0 0
  %255 = vmatpush2.bf16.msra.mxu0 0
  %256 = vmatprep.subr.bf16.mxu0 0
  %257 = vmatpush2.bf16.msra.mxu0 0
  %258 = vmatprep.subr.bf16.mxu0 0
  %259 = vmatpush2.bf16.msra.mxu0 0
  %260 = vmatprep.subr.bf16.mxu0 0
  %261 = vmatpush2.bf16.msra.mxu0 0
  %262 = vmatprep.subr.bf16.mxu0 0
  %263 = vmatpush2.bf16.msra.mxu0 0
  %264 = vmatprep.mubr.bf16.mxu0 0
  %265 = vmatmul.mubr.bf16.gmra.mxu0 %v230
  %v266 = vpop.f32.mrf.mxu0
  %v267 = vadd.f32 %v59, %v266
  %v268 = vpop.f32.mrf.mxu0
  %v269 = vpop.f32.mrf.mxu0
  %v270 = vpop.f32.mrf.mxu0
  %271 = vdwg.mxu0
  %v272 = vxor.u32 %v267, 2147483648
  %v273 = vmul.f32 %v272, 1.442695
  %v274 = vpow.pop %v273
  %v275 = vadd.f32 %v274, 1.0
  %v276 = vrcp.pop %v275
  %v277 = vmul.f32 1.0, %v276
  %v278 = vtanh.pop %v267
  %280 = vrot.lane.b32.xlu0 %v62, 32
  %v281 = vpop.permute.xlu0 %280
  %v283 = vmul.f32 %v277, %v281
  %285 = vrot.lane.b32.xlu0 %v278, 64
  %v286 = vpop.permute.xlu0 %285
  %v288 = vmul.f32 %v277, %v286
  %290 = vrot.lane.b32.xlu0 %v288, 32
  %v291 = vpop.permute.xlu0 %290
  %v293 = vadd.f32 %v283, %v291
  %v294 = vtanh.pop %v293
  %296 = vrot.lane.b32.xlu0 %v294, 64
  %v297 = vpop.permute.xlu0 %296
  %v299 = vmul.f32 %v277, %v297
  %v301 = vcombine.high %v299, %v299
  %v303 = vunpack.c.l.s4 1966171168
  %v304 = vunpack.c.0.s8 %v303
  %v305 = vlaneseq
  %v306 = vshrl.u32 %v305, 7
  %v307 = vsub.s32 %v304, %v306
  %v308 = vrot.slane %v299, %v307
  %v310 = vunpack.c.l.s4 1966171168
  %v311 = vunpack.c.0.s8 %v310
  %v312 = vlaneseq
  %v313 = vshrl.u32 %v312, 7
  %v314 = vsub.s32 %v311, %v313
  %v315 = vrot.slane %v301, %v314
  %v316 = vcombine.high %v308, %v308
  %v317 = vcombine.high %v315, %v315
  %v319 = vunpack.c.l.s4 1966171168
  %v320 = vunpack.c.0.s8 %v319
  %v321 = vlaneseq
  %v322 = vshrl.u32 %v321, 7
  %v323 = vsub.s32 %v320, %v322
  %v324 = vrot.slane %v308, %v323
  %v326 = vunpack.c.l.s4 1966171168
  %v327 = vunpack.c.0.s8 %v326
  %v328 = vlaneseq
  %v329 = vshrl.u32 %v328, 7
  %v330 = vsub.s32 %v327, %v329
  %v331 = vrot.slane %v315, %v330
  %v333 = vunpack.c.l.s4 1966171168
  %v334 = vunpack.c.0.s8 %v333
  %v335 = vlaneseq
  %v336 = vshrl.u32 %v335, 7
  %v337 = vsub.s32 %v334, %v336
  %v338 = vrot.slane %v316, %v337
  %v340 = vunpack.c.l.s4 1966171168
  %v341 = vunpack.c.0.s8 %v340
  %v342 = vlaneseq
  %v343 = vshrl.u32 %v342, 7
  %v344 = vsub.s32 %v341, %v343
  %v345 = vrot.slane %v317, %v344
  %v346 = vcombine.high %v324, %v324
  %v347 = vcombine.high %v331, %v331
  %v348 = vcombine.high %v338, %v338
  %v349 = vcombine.high %v345, %v345
  %v350 = vlaneseq
  %v351 = vshrl.u32 %v350, 7
  %v352 = vsub.s32 0, %v351
  %v353 = vrot.slane %v324, %v352
  %v354 = vlaneseq
  %v355 = vshrl.u32 %v354, 7
  %v356 = vsub.s32 0, %v355
  %v357 = vrot.slane %v338, %v356
  %v358 = vlaneseq
  %v359 = vshrl.u32 %v358, 7
  %v360 = vsub.s32 0, %v359
  %v361 = vrot.slane %v346, %v360
  %v362 = vlaneseq
  %v363 = vshrl.u32 %v362, 7
  %v364 = vsub.s32 0, %v363
  %v365 = vrot.slane %v348, %v364
  %v366 = vlaneseq
  %v367 = vshrl.u32 %v366, 7
  %v368 = vsub.s32 0, %v367
  %v369 = vrot.slane %v331, %v368
  %v370 = vlaneseq
  %v371 = vshrl.u32 %v370, 7
  %v372 = vsub.s32 0, %v371
  %v373 = vrot.slane %v345, %v372
  %v374 = vlaneseq
  %v375 = vshrl.u32 %v374, 7
  %v376 = vsub.s32 0, %v375
  %v377 = vrot.slane %v347, %v376
  %v378 = vlaneseq
  %v379 = vshrl.u32 %v378, 7
  %v380 = vsub.s32 0, %v379
  %v381 = vrot.slane %v349, %v380
  %382 = vrot.lane.b32.xlu0 %v353, 32
  %v383 = vpop.permute.xlu0 %382
  %384 = vrot.lane.b32.xlu0 %v357, 32
  %v385 = vpop.permute.xlu0 %384
  %386 = vrot.lane.b32.xlu0 %v361, 32
  %v387 = vpop.permute.xlu0 %386
  %388 = vrot.lane.b32.xlu0 %v365, 32
  %v389 = vpop.permute.xlu0 %388
  %390 = vrot.lane.b32.xlu0 %v369, 32
  %v391 = vpop.permute.xlu0 %390
  %392 = vrot.lane.b32.xlu0 %v373, 32
  %v393 = vpop.permute.xlu0 %392
  %394 = vrot.lane.b32.xlu0 %v377, 32
  %v395 = vpop.permute.xlu0 %394
  %396 = vrot.lane.b32.xlu0 %v381, 32
  %v397 = vpop.permute.xlu0 %396
  %vm406 = vcmask 253952
  %407 = vst.msk [vmem:[%s4] sm:$0x1] %vm406, %v383
  %408 = vst.msk [vmem:[%s4 + $0x8] sm:$0x1] %vm406, %v385
  %409 = vst.msk [vmem:[%s4 + $0x10] sm:$0x1] %vm406, %v387
  %410 = vst.msk [vmem:[%s4 + $0x18] sm:$0x1] %vm406, %v389
  %411 = vst.msk [vmem:[%s4 + $0x20] sm:$0x1] %vm406, %v391
  %412 = vst.msk [vmem:[%s4 + $0x28] sm:$0x1] %vm406, %v393
  %413 = vst.msk [vmem:[%s4 + $0x30] sm:$0x1] %vm406, %v395
  %414 = vst.msk [vmem:[%s4 + $0x38] sm:$0x1] %vm406, %v397
  %v415 = vld [vmem:[%s0] sm:$0x1]
  %v416 = vld [vmem:[%s0 + $0x4] sm:$0x1]
  %v417 = vld [vmem:[%s0 + $0x8] sm:$0x1]
  %v418 = vld [vmem:[%s0 + $0xc] sm:$0x1]
  %v419 = vld [vmem:[%s0 + $0x10] sm:$0x1]
  %v420 = vld [vmem:[%s0 + $0x14] sm:$0x1]
  %v421 = vld [vmem:[%s0 + $0x18] sm:$0x1]
  %v422 = vld [vmem:[%s0 + $0x1c] sm:$0x1]
  %v423 = vld [vmem:[%s32] sm:$0x8]
  %v424 = vld [vmem:[%s32 + $0x4] sm:$0x8]
  %v425 = vld [vmem:[%s32 + $0x8] sm:$0x8]
  %v426 = vld [vmem:[%s32 + $0xc] sm:$0x8]
  %v427 = vld [vmem:[%s32 + $0x10] sm:$0x8]
  %v428 = vld [vmem:[%s32 + $0x14] sm:$0x8]
  %v429 = vld [vmem:[%s32 + $0x18] sm:$0x8]
  %v430 = vld [vmem:[%s32 + $0x1c] sm:$0x8]
  %v431 = vpack.c.bf16 %v299, %v299
  %v440 = vunpack.c.l.b16 %v415
  %v441 = vunpack.c.l.b16 %v416
  %v442 = vunpack.c.l.b16 %v417
  %v443 = vunpack.c.l.b16 %v418
  %v444 = vunpack.c.l.b16 %v419
  %v445 = vunpack.c.l.b16 %v420
  %v446 = vunpack.c.l.b16 %v421
  %v447 = vunpack.c.l.b16 %v422
  %v448 = vpack.c.b16 %v440, %v440
  %v449 = vpack.c.b16 %v441, %v441
  %v450 = vpack.c.b16 %v442, %v442
  %v451 = vpack.c.b16 %v443, %v443
  %v452 = vpack.c.b16 %v444, %v444
  %v453 = vpack.c.b16 %v445, %v445
  %v454 = vpack.c.b16 %v446, %v446
  %v455 = vpack.c.b16 %v447, %v447
  %v456 = vunpack.c.l.b16 %v448
  %v457 = vunpack.c.l.b16 %v449
  %v458 = vunpack.c.l.b16 %v450
  %v459 = vunpack.c.l.b16 %v451
  %v460 = vunpack.c.l.b16 %v452
  %v461 = vunpack.c.l.b16 %v453
  %v462 = vunpack.c.l.b16 %v454
  %v463 = vunpack.c.l.b16 %v455
  %v464 = vrot.slane %v457, 7
  %v465 = vsel %vm116, %v464, %v456
  %v466 = vrot.slane %v458, 6
  %v467 = vsel %vm119, %v466, %v465
  %v468 = vrot.slane %v459, 5
  %v469 = vsel %vm122, %v468, %v467
  %v470 = vrot.slane %v460, 4
  %v471 = vsel %vm125, %v470, %v469
  %v472 = vrot.slane %v461, 3
  %v473 = vsel %vm128, %v472, %v471
  %v474 = vrot.slane %v462, 2
  %v475 = vsel %vm131, %v474, %v473
  %v476 = vrot.slane %v463, 1
  %v477 = vpack.c.b16 %v476, %v475
  %v486 = vunpack.c.l.b16 %v423
  %v487 = vunpack.c.l.b16 %v424
  %v488 = vunpack.c.l.b16 %v425
  %v489 = vunpack.c.l.b16 %v426
  %v490 = vunpack.c.l.b16 %v427
  %v491 = vunpack.c.l.b16 %v428
  %v492 = vunpack.c.l.b16 %v429
  %v493 = vunpack.c.l.b16 %v430
  %v494 = vpack.c.b16 %v486, %v486
  %v495 = vpack.c.b16 %v487, %v487
  %v496 = vpack.c.b16 %v488, %v488
  %v497 = vpack.c.b16 %v489, %v489
  %v498 = vpack.c.b16 %v490, %v490
  %v499 = vpack.c.b16 %v491, %v491
  %v500 = vpack.c.b16 %v492, %v492
  %v501 = vpack.c.b16 %v493, %v493
  %v502 = vunpack.c.l.b16 %v494
  %v503 = vunpack.c.l.b16 %v495
  %v504 = vunpack.c.l.b16 %v496
  %v505 = vunpack.c.l.b16 %v497
  %v506 = vunpack.c.l.b16 %v498
  %v507 = vunpack.c.l.b16 %v499
  %v508 = vunpack.c.l.b16 %v500
  %v509 = vunpack.c.l.b16 %v501
  %v510 = vrot.slane %v502, 5
  %v511 = vrot.slane %v503, 4
  %v512 = vsel %vm116, %v511, %v510
  %v513 = vrot.slane %v504, 3
  %v514 = vsel %vm119, %v513, %v512
  %v515 = vrot.slane %v505, 2
  %v516 = vsel %vm122, %v515, %v514
  %v517 = vrot.slane %v506, 1
  %v518 = vsel %vm125, %v517, %v516
  %v519 = vsel %vm128, %v507, %v518
  %v520 = vrot.slane %v508, 7
  %v521 = vsel %vm131, %v520, %v519
  %v522 = vrot.slane %v509, 6
  %v523 = vpack.c.b16 %v522, %v521
  %524 = vrot.lane.b32.xlu0 %v523, 32
  %v525 = vpop.permute.xlu0 %524
  %v527 = vshrl.u32 %v431, 16
  %v529 = vrot.slane %v527, 7
  %v530 = vshll.u32 %v431, 16
  %v532 = vor.u32 %v529, %v530
  %533 = vrot.lane.b32.xlu0 %v532, 96
  %v534 = vpop.permute.xlu0 %533
  %v537 = vsel %vm186, %v477, %v525
  %v539 = vsel %vm190, %v537, %v534
  %v540 = vshrl.u32 %v539, 16
  %v542 = vshll.u32 %v539, 16
  %v544 = vrot.slane %v542, 1
  %v545 = vor.u32 %v540, %v544
  %v547 = vsel %vm229, %v545, 0
  %549 = vmatprep.subr.bf16.mxu0 0
  %550 = vmatpush1.bf16.msra.mxu0 0
  %551 = vmatprep.subr.bf16.mxu0 0
  %552 = vmatpush1.bf16.msra.mxu0 0
  %553 = vmatprep.subr.bf16.mxu0 0
  %554 = vmatpush1.bf16.msra.mxu0 %v222
  %555 = vmatprep.subr.bf16.mxu0 0
  %556 = vmatpush1.bf16.msra.mxu0 %v221
  %557 = vmatprep.subr.bf16.mxu0 0
  %558 = vmatpush1.bf16.msra.mxu0 %v220
  %559 = vmatprep.subr.bf16.mxu0 0
  %560 = vmatpush1.bf16.msra.mxu0 %v219
  %561 = vmatprep.subr.bf16.mxu0 0
  %562 = vmatpush1.bf16.msra.mxu0 %v218
  %563 = vmatprep.subr.bf16.mxu0 0
  %564 = vmatpush1.bf16.msra.mxu0 %v217
  %565 = vmatprep.subr.bf16.mxu0 0
  %566 = vmatpush2.bf16.msra.mxu0 0
  %567 = vmatprep.subr.bf16.mxu0 0
  %568 = vmatpush2.bf16.msra.mxu0 0
  %569 = vmatprep.subr.bf16.mxu0 0
  %570 = vmatpush2.bf16.msra.mxu0 0
  %571 = vmatprep.subr.bf16.mxu0 0
  %572 = vmatpush2.bf16.msra.mxu0 0
  %573 = vmatprep.subr.bf16.mxu0 0
  %574 = vmatpush2.bf16.msra.mxu0 0
  %575 = vmatprep.subr.bf16.mxu0 0
  %576 = vmatpush2.bf16.msra.mxu0 0
  %577 = vmatprep.subr.bf16.mxu0 0
  %578 = vmatpush2.bf16.msra.mxu0 0
  %579 = vmatprep.subr.bf16.mxu0 0
  %580 = vmatpush2.bf16.msra.mxu0 0
  %581 = vmatprep.mubr.bf16.mxu0 0
  %582 = vmatmul.mubr.bf16.gmra.mxu0 %v547
  %v583 = vpop.f32.mrf.mxu0
  %v584 = vadd.f32 %v59, %v583
  %v585 = vpop.f32.mrf.mxu0
  %v586 = vpop.f32.mrf.mxu0
  %v587 = vpop.f32.mrf.mxu0
  %588 = vdwg.mxu0
  %v589 = vxor.u32 %v584, 2147483648
  %v590 = vmul.f32 %v589, 1.442695
  %v591 = vpow.pop %v590
  %v592 = vadd.f32 %v591, 1.0
  %v593 = vrcp.pop %v592
  %v594 = vmul.f32 1.0, %v593
  %v595 = vtanh.pop %v584
  %v596 = vmul.f32 %v594, %v293
  %598 = vrot.lane.b32.xlu0 %v595, 64
  %v599 = vpop.permute.xlu0 %598
  %v601 = vmul.f32 %v594, %v599
  %603 = vrot.lane.b32.xlu0 %v601, 32
  %v604 = vpop.permute.xlu0 %603
  %v606 = vadd.f32 %v596, %v604
  %v607 = vtanh.pop %v606
  %609 = vrot.lane.b32.xlu0 %v607, 64
  %v610 = vpop.permute.xlu0 %609
  %v612 = vmul.f32 %v594, %v610
  %v614 = vcombine.high %v612, %v612
  %v616 = vunpack.c.l.s4 1966171168
  %v617 = vunpack.c.0.s8 %v616
  %v618 = vlaneseq
  %v619 = vshrl.u32 %v618, 7
  %v620 = vsub.s32 %v617, %v619
  %v621 = vrot.slane %v612, %v620
  %v623 = vunpack.c.l.s4 1966171168
  %v624 = vunpack.c.0.s8 %v623
  %v625 = vlaneseq
  %v626 = vshrl.u32 %v625, 7
  %v627 = vsub.s32 %v624, %v626
  %v628 = vrot.slane %v614, %v627
  %v629 = vcombine.high %v621, %v621
  %v630 = vcombine.high %v628, %v628
  %v632 = vunpack.c.l.s4 1966171168
  %v633 = vunpack.c.0.s8 %v632
  %v634 = vlaneseq
  %v635 = vshrl.u32 %v634, 7
  %v636 = vsub.s32 %v633, %v635
  %v637 = vrot.slane %v621, %v636
  %v639 = vunpack.c.l.s4 1966171168
  %v640 = vunpack.c.0.s8 %v639
  %v641 = vlaneseq
  %v642 = vshrl.u32 %v641, 7
  %v643 = vsub.s32 %v640, %v642
  %v644 = vrot.slane %v628, %v643
  %v646 = vunpack.c.l.s4 1966171168
  %v647 = vunpack.c.0.s8 %v646
  %v648 = vlaneseq
  %v649 = vshrl.u32 %v648, 7
  %v650 = vsub.s32 %v647, %v649
  %v651 = vrot.slane %v629, %v650
  %v653 = vunpack.c.l.s4 1966171168
  %v654 = vunpack.c.0.s8 %v653
  %v655 = vlaneseq
  %v656 = vshrl.u32 %v655, 7
  %v657 = vsub.s32 %v654, %v656
  %v658 = vrot.slane %v630, %v657
  %v659 = vcombine.high %v637, %v637
  %v660 = vcombine.high %v644, %v644
  %v661 = vcombine.high %v651, %v651
  %v662 = vcombine.high %v658, %v658
  %v663 = vlaneseq
  %v664 = vshrl.u32 %v663, 7
  %v665 = vsub.s32 0, %v664
  %v666 = vrot.slane %v637, %v665
  %v667 = vlaneseq
  %v668 = vshrl.u32 %v667, 7
  %v669 = vsub.s32 0, %v668
  %v670 = vrot.slane %v651, %v669
  %v671 = vlaneseq
  %v672 = vshrl.u32 %v671, 7
  %v673 = vsub.s32 0, %v672
  %v674 = vrot.slane %v659, %v673
  %v675 = vlaneseq
  %v676 = vshrl.u32 %v675, 7
  %v677 = vsub.s32 0, %v676
  %v678 = vrot.slane %v661, %v677
  %v679 = vlaneseq
  %v680 = vshrl.u32 %v679, 7
  %v681 = vsub.s32 0, %v680
  %v682 = vrot.slane %v644, %v681
  %v683 = vlaneseq
  %v684 = vshrl.u32 %v683, 7
  %v685 = vsub.s32 0, %v684
  %v686 = vrot.slane %v658, %v685
  %v687 = vlaneseq
  %v688 = vshrl.u32 %v687, 7
  %v689 = vsub.s32 0, %v688
  %v690 = vrot.slane %v660, %v689
  %v691 = vlaneseq
  %v692 = vshrl.u32 %v691, 7
  %v693 = vsub.s32 0, %v692
  %v694 = vrot.slane %v662, %v693
  %695 = vrot.lane.b32.xlu0 %v666, 32
  %v696 = vpop.permute.xlu0 %695
  %697 = vrot.lane.b32.xlu0 %v670, 32
  %v698 = vpop.permute.xlu0 %697
  %699 = vrot.lane.b32.xlu0 %v674, 32
  %v700 = vpop.permute.xlu0 %699
  %701 = vrot.lane.b32.xlu0 %v678, 32
  %v702 = vpop.permute.xlu0 %701
  %703 = vrot.lane.b32.xlu0 %v682, 32
  %v704 = vpop.permute.xlu0 %703
  %705 = vrot.lane.b32.xlu0 %v686, 32
  %v706 = vpop.permute.xlu0 %705
  %707 = vrot.lane.b32.xlu0 %v690, 32
  %v708 = vpop.permute.xlu0 %707
  %709 = vrot.lane.b32.xlu0 %v694, 32
  %v710 = vpop.permute.xlu0 %709
  %719 = vst.msk [vmem:[%s4 + $0x1] sm:$0x1] %vm406, %v696
  %720 = vst.msk [vmem:[%s4 + $0x9] sm:$0x1] %vm406, %v698
  %721 = vst.msk [vmem:[%s4 + $0x11] sm:$0x1] %vm406, %v700
  %722 = vst.msk [vmem:[%s4 + $0x19] sm:$0x1] %vm406, %v702
  %723 = vst.msk [vmem:[%s4 + $0x21] sm:$0x1] %vm406, %v704
  %724 = vst.msk [vmem:[%s4 + $0x29] sm:$0x1] %vm406, %v706
  %725 = vst.msk [vmem:[%s4 + $0x31] sm:$0x1] %vm406, %v708
  %726 = vst.msk [vmem:[%s4 + $0x39] sm:$0x1] %vm406, %v710
  %v727 = vld [vmem:[%s0] sm:$0x2]
  %v728 = vld [vmem:[%s0 + $0x4] sm:$0x2]
  %v729 = vld [vmem:[%s0 + $0x8] sm:$0x2]
  %v730 = vld [vmem:[%s0 + $0xc] sm:$0x2]
  %v731 = vld [vmem:[%s0 + $0x10] sm:$0x2]
  %v732 = vld [vmem:[%s0 + $0x14] sm:$0x2]
  %v733 = vld [vmem:[%s0 + $0x18] sm:$0x2]
  %v734 = vld [vmem:[%s0 + $0x1c] sm:$0x2]
  %v735 = vld [vmem:[%s32] sm:$0x4]
  %v736 = vld [vmem:[%s32 + $0x4] sm:$0x4]
  %v737 = vld [vmem:[%s32 + $0x8] sm:$0x4]
  %v738 = vld [vmem:[%s32 + $0xc] sm:$0x4]
  %v739 = vld [vmem:[%s32 + $0x10] sm:$0x4]
  %v740 = vld [vmem:[%s32 + $0x14] sm:$0x4]
  %v741 = vld [vmem:[%s32 + $0x18] sm:$0x4]
  %v742 = vld [vmem:[%s32 + $0x1c] sm:$0x4]
  %v743 = vpack.c.bf16 %v612, %v612
  %v752 = vunpack.c.l.b16 %v727
  %v753 = vunpack.c.l.b16 %v728
  %v754 = vunpack.c.l.b16 %v729
  %v755 = vunpack.c.l.b16 %v730
  %v756 = vunpack.c.l.b16 %v731
  %v757 = vunpack.c.l.b16 %v732
  %v758 = vunpack.c.l.b16 %v733
  %v759 = vunpack.c.l.b16 %v734
  %v760 = vpack.c.b16 %v752, %v752
  %v761 = vpack.c.b16 %v753, %v753
  %v762 = vpack.c.b16 %v754, %v754
  %v763 = vpack.c.b16 %v755, %v755
  %v764 = vpack.c.b16 %v756, %v756
  %v765 = vpack.c.b16 %v757, %v757
  %v766 = vpack.c.b16 %v758, %v758
  %v767 = vpack.c.b16 %v759, %v759
  %v768 = vunpack.c.l.b16 %v760
  %v769 = vunpack.c.l.b16 %v761
  %v770 = vunpack.c.l.b16 %v762
  %v771 = vunpack.c.l.b16 %v763
  %v772 = vunpack.c.l.b16 %v764
  %v773 = vunpack.c.l.b16 %v765
  %v774 = vunpack.c.l.b16 %v766
  %v775 = vunpack.c.l.b16 %v767
  %v776 = vrot.slane %v769, 7
  %v777 = vsel %vm119, %v776, %v768
  %v778 = vrot.slane %v770, 6
  %v779 = vsel %vm122, %v778, %v777
  %v780 = vrot.slane %v771, 5
  %v781 = vsel %vm125, %v780, %v779
  %v782 = vrot.slane %v772, 4
  %v783 = vsel %vm128, %v782, %v781
  %v784 = vrot.slane %v773, 3
  %v785 = vsel %vm131, %v784, %v783
  %v786 = vrot.slane %v774, 2
  %v787 = vrot.slane %v775, 1
  %v788 = vsel %vm113, %v787, %v786
  %v789 = vpack.c.b16 %v788, %v785
  %v798 = vunpack.c.l.b16 %v735
  %v799 = vunpack.c.l.b16 %v736
  %v800 = vunpack.c.l.b16 %v737
  %v801 = vunpack.c.l.b16 %v738
  %v802 = vunpack.c.l.b16 %v739
  %v803 = vunpack.c.l.b16 %v740
  %v804 = vunpack.c.l.b16 %v741
  %v805 = vunpack.c.l.b16 %v742
  %v806 = vpack.c.b16 %v798, %v798
  %v807 = vpack.c.b16 %v799, %v799
  %v808 = vpack.c.b16 %v800, %v800
  %v809 = vpack.c.b16 %v801, %v801
  %v810 = vpack.c.b16 %v802, %v802
  %v811 = vpack.c.b16 %v803, %v803
  %v812 = vpack.c.b16 %v804, %v804
  %v813 = vpack.c.b16 %v805, %v805
  %v814 = vunpack.c.l.b16 %v806
  %v815 = vunpack.c.l.b16 %v807
  %v816 = vunpack.c.l.b16 %v808
  %v817 = vunpack.c.l.b16 %v809
  %v818 = vunpack.c.l.b16 %v810
  %v819 = vunpack.c.l.b16 %v811
  %v820 = vunpack.c.l.b16 %v812
  %v821 = vunpack.c.l.b16 %v813
  %v822 = vrot.slane %v814, 3
  %v823 = vrot.slane %v815, 2
  %v824 = vsel %vm119, %v823, %v822
  %v825 = vrot.slane %v816, 1
  %v826 = vsel %vm122, %v825, %v824
  %v827 = vsel %vm125, %v817, %v826
  %v828 = vrot.slane %v818, 7
  %v829 = vsel %vm128, %v828, %v827
  %v830 = vrot.slane %v819, 6
  %v831 = vsel %vm131, %v830, %v829
  %v832 = vrot.slane %v820, 5
  %v833 = vrot.slane %v821, 4
  %v834 = vsel %vm113, %v833, %v832
  %v835 = vpack.c.b16 %v834, %v831
  %836 = vrot.lane.b32.xlu0 %v835, 32
  %v837 = vpop.permute.xlu0 %836
  %v839 = vrot.slane %v743, 7
  %840 = vrot.lane.b32.xlu0 %v839, 96
  %v841 = vpop.permute.xlu0 %840
  %v844 = vsel %vm186, %v789, %v837
  %v846 = vsel %vm190, %v844, %v841
  %v848 = vrot.slane %v846, 1
  %v850 = vsel %vm229, %v848, 0
  %852 = vmatprep.subr.bf16.mxu0 0
  %853 = vmatpush1.bf16.msra.mxu0 0
  %854 = vmatprep.subr.bf16.mxu0 0
  %855 = vmatpush1.bf16.msra.mxu0 0
  %856 = vmatprep.subr.bf16.mxu0 0
  %857 = vmatpush1.bf16.msra.mxu0 %v222
  %858 = vmatprep.subr.bf16.mxu0 0
  %859 = vmatpush1.bf16.msra.mxu0 %v221
  %860 = vmatprep.subr.bf16.mxu0 0
  %861 = vmatpush1.bf16.msra.mxu0 %v220
  %862 = vmatprep.subr.bf16.mxu0 0
  %863 = vmatpush1.bf16.msra.mxu0 %v219
  %864 = vmatprep.subr.bf16.mxu0 0
  %865 = vmatpush1.bf16.msra.mxu0 %v218
  %866 = vmatprep.subr.bf16.mxu0 0
  %867 = vmatpush1.bf16.msra.mxu0 %v217
  %868 = vmatprep.subr.bf16.mxu0 0
  %869 = vmatpush2.bf16.msra.mxu0 0
  %870 = vmatprep.subr.bf16.mxu0 0
  %871 = vmatpush2.bf16.msra.mxu0 0
  %872 = vmatprep.subr.bf16.mxu0 0
  %873 = vmatpush2.bf16.msra.mxu0 0
  %874 = vmatprep.subr.bf16.mxu0 0
  %875 = vmatpush2.bf16.msra.mxu0 0
  %876 = vmatprep.subr.bf16.mxu0 0
  %877 = vmatpush2.bf16.msra.mxu0 0
  %878 = vmatprep.subr.bf16.mxu0 0
  %879 = vmatpush2.bf16.msra.mxu0 0
  %880 = vmatprep.subr.bf16.mxu0 0
  %881 = vmatpush2.bf16.msra.mxu0 0
  %882 = vmatprep.subr.bf16.mxu0 0
  %883 = vmatpush2.bf16.msra.mxu0 0
  %884 = vmatprep.mubr.bf16.mxu0 0
  %885 = vmatmul.mubr.bf16.gmra.mxu0 %v850
  %v886 = vpop.f32.mrf.mxu0
  %v887 = vadd.f32 %v59, %v886
  %v888 = vpop.f32.mrf.mxu0
  %v889 = vpop.f32.mrf.mxu0
  %v890 = vpop.f32.mrf.mxu0
  %891 = vdwg.mxu0
  %v892 = vxor.u32 %v887, 2147483648
  %v893 = vmul.f32 %v892, 1.442695
  %v894 = vpow.pop %v893
  %v895 = vadd.f32 %v894, 1.0
  %v896 = vrcp.pop %v895
  %v897 = vmul.f32 1.0, %v896
  %v898 = vtanh.pop %v887
  %v899 = vmul.f32 %v897, %v606
  %901 = vrot.lane.b32.xlu0 %v898, 64
  %v902 = vpop.permute.xlu0 %901
  %v904 = vmul.f32 %v897, %v902
  %906 = vrot.lane.b32.xlu0 %v904, 32
  %v907 = vpop.permute.xlu0 %906
  %v909 = vadd.f32 %v899, %v907
  %v910 = vtanh.pop %v909
  %912 = vrot.lane.b32.xlu0 %v910, 64
  %v913 = vpop.permute.xlu0 %912
  %v915 = vmul.f32 %v897, %v913
  %v917 = vcombine.high %v915, %v915
  %v919 = vunpack.c.l.s4 1966171168
  %v920 = vunpack.c.0.s8 %v919
  %v921 = vlaneseq
  %v922 = vshrl.u32 %v921, 7
  %v923 = vsub.s32 %v920, %v922
  %v924 = vrot.slane %v915, %v923
  %v926 = vunpack.c.l.s4 1966171168
  %v927 = vunpack.c.0.s8 %v926
  %v928 = vlaneseq
  %v929 = vshrl.u32 %v928, 7
  %v930 = vsub.s32 %v927, %v929
  %v931 = vrot.slane %v917, %v930
  %v932 = vcombine.high %v924, %v924
  %v933 = vcombine.high %v931, %v931
  %v935 = vunpack.c.l.s4 1966171168
  %v936 = vunpack.c.0.s8 %v935
  %v937 = vlaneseq
  %v938 = vshrl.u32 %v937, 7
  %v939 = vsub.s32 %v936, %v938
  %v940 = vrot.slane %v924, %v939
  %v942 = vunpack.c.l.s4 1966171168
  %v943 = vunpack.c.0.s8 %v942
  %v944 = vlaneseq
  %v945 = vshrl.u32 %v944, 7
  %v946 = vsub.s32 %v943, %v945
  %v947 = vrot.slane %v931, %v946
  %v949 = vunpack.c.l.s4 1966171168
  %v950 = vunpack.c.0.s8 %v949
  %v951 = vlaneseq
  %v952 = vshrl.u32 %v951, 7
  %v953 = vsub.s32 %v950, %v952
  %v954 = vrot.slane %v932, %v953
  %v956 = vunpack.c.l.s4 1966171168
  %v957 = vunpack.c.0.s8 %v956
  %v958 = vlaneseq
  %v959 = vshrl.u32 %v958, 7
  %v960 = vsub.s32 %v957, %v959
  %v961 = vrot.slane %v933, %v960
  %v962 = vcombine.high %v940, %v940
  %v963 = vcombine.high %v947, %v947
  %v964 = vcombine.high %v954, %v954
  %v965 = vcombine.high %v961, %v961
  %v966 = vlaneseq
  %v967 = vshrl.u32 %v966, 7
  %v968 = vsub.s32 0, %v967
  %v969 = vrot.slane %v940, %v968
  %v970 = vlaneseq
  %v971 = vshrl.u32 %v970, 7
  %v972 = vsub.s32 0, %v971
  %v973 = vrot.slane %v954, %v972
  %v974 = vlaneseq
  %v975 = vshrl.u32 %v974, 7
  %v976 = vsub.s32 0, %v975
  %v977 = vrot.slane %v962, %v976
  %v978 = vlaneseq
  %v979 = vshrl.u32 %v978, 7
  %v980 = vsub.s32 0, %v979
  %v981 = vrot.slane %v964, %v980
  %v982 = vlaneseq
  %v983 = vshrl.u32 %v982, 7
  %v984 = vsub.s32 0, %v983
  %v985 = vrot.slane %v947, %v984
  %v986 = vlaneseq
  %v987 = vshrl.u32 %v986, 7
  %v988 = vsub.s32 0, %v987
  %v989 = vrot.slane %v961, %v988
  %v990 = vlaneseq
  %v991 = vshrl.u32 %v990, 7
  %v992 = vsub.s32 0, %v991
  %v993 = vrot.slane %v963, %v992
  %v994 = vlaneseq
  %v995 = vshrl.u32 %v994, 7
  %v996 = vsub.s32 0, %v995
  %v997 = vrot.slane %v965, %v996
  %998 = vrot.lane.b32.xlu0 %v969, 32
  %v999 = vpop.permute.xlu0 %998
  %1000 = vrot.lane.b32.xlu0 %v973, 32
  %v1001 = vpop.permute.xlu0 %1000
  %1002 = vrot.lane.b32.xlu0 %v977, 32
  %v1003 = vpop.permute.xlu0 %1002
  %1004 = vrot.lane.b32.xlu0 %v981, 32
  %v1005 = vpop.permute.xlu0 %1004
  %1006 = vrot.lane.b32.xlu0 %v985, 32
  %v1007 = vpop.permute.xlu0 %1006
  %1008 = vrot.lane.b32.xlu0 %v989, 32
  %v1009 = vpop.permute.xlu0 %1008
  %1010 = vrot.lane.b32.xlu0 %v993, 32
  %v1011 = vpop.permute.xlu0 %1010
  %1012 = vrot.lane.b32.xlu0 %v997, 32
  %v1013 = vpop.permute.xlu0 %1012
  %1022 = vst.msk [vmem:[%s4 + $0x2] sm:$0x1] %vm406, %v999
  %1023 = vst.msk [vmem:[%s4 + $0xa] sm:$0x1] %vm406, %v1001
  %1024 = vst.msk [vmem:[%s4 + $0x12] sm:$0x1] %vm406, %v1003
  %1025 = vst.msk [vmem:[%s4 + $0x1a] sm:$0x1] %vm406, %v1005
  %1026 = vst.msk [vmem:[%s4 + $0x22] sm:$0x1] %vm406, %v1007
  %1027 = vst.msk [vmem:[%s4 + $0x2a] sm:$0x1] %vm406, %v1009
  %1028 = vst.msk [vmem:[%s4 + $0x32] sm:$0x1] %vm406, %v1011
  %1029 = vst.msk [vmem:[%s4 + $0x3a] sm:$0x1] %vm406, %v1013
  %v1030 = vld [vmem:[%s0] sm:$0x2]
  %v1031 = vld [vmem:[%s0 + $0x4] sm:$0x2]
  %v1032 = vld [vmem:[%s0 + $0x8] sm:$0x2]
  %v1033 = vld [vmem:[%s0 + $0xc] sm:$0x2]
  %v1034 = vld [vmem:[%s0 + $0x10] sm:$0x2]
  %v1035 = vld [vmem:[%s0 + $0x14] sm:$0x2]
  %v1036 = vld [vmem:[%s0 + $0x18] sm:$0x2]
  %v1037 = vld [vmem:[%s0 + $0x1c] sm:$0x2]
  %v1038 = vld [vmem:[%s32] sm:$0x4]
  %v1039 = vld [vmem:[%s32 + $0x4] sm:$0x4]
  %v1040 = vld [vmem:[%s32 + $0x8] sm:$0x4]
  %v1041 = vld [vmem:[%s32 + $0xc] sm:$0x4]
  %v1042 = vld [vmem:[%s32 + $0x10] sm:$0x4]
  %v1043 = vld [vmem:[%s32 + $0x14] sm:$0x4]
  %v1044 = vld [vmem:[%s32 + $0x18] sm:$0x4]
  %v1045 = vld [vmem:[%s32 + $0x1c] sm:$0x4]
  %v1046 = vpack.c.bf16 %v915, %v915
  %v1055 = vunpack.c.l.b16 %v1030
  %v1056 = vunpack.c.l.b16 %v1031
  %v1057 = vunpack.c.l.b16 %v1032
  %v1058 = vunpack.c.l.b16 %v1033
  %v1059 = vunpack.c.l.b16 %v1034
  %v1060 = vunpack.c.l.b16 %v1035
  %v1061 = vunpack.c.l.b16 %v1036
  %v1062 = vunpack.c.l.b16 %v1037
  %v1063 = vpack.c.b16 %v1055, %v1055
  %v1064 = vpack.c.b16 %v1056, %v1056
  %v1065 = vpack.c.b16 %v1057, %v1057
  %v1066 = vpack.c.b16 %v1058, %v1058
  %v1067 = vpack.c.b16 %v1059, %v1059
  %v1068 = vpack.c.b16 %v1060, %v1060
  %v1069 = vpack.c.b16 %v1061, %v1061
  %v1070 = vpack.c.b16 %v1062, %v1062
  %v1071 = vunpack.c.l.b16 %v1063
  %v1072 = vunpack.c.l.b16 %v1064
  %v1073 = vunpack.c.l.b16 %v1065
  %v1074 = vunpack.c.l.b16 %v1066
  %v1075 = vunpack.c.l.b16 %v1067
  %v1076 = vunpack.c.l.b16 %v1068
  %v1077 = vunpack.c.l.b16 %v1069
  %v1078 = vunpack.c.l.b16 %v1070
  %v1079 = vrot.slane %v1072, 7
  %v1080 = vsel %vm122, %v1079, %v1071
  %v1081 = vrot.slane %v1073, 6
  %v1082 = vsel %vm125, %v1081, %v1080
  %v1083 = vrot.slane %v1074, 5
  %v1084 = vsel %vm128, %v1083, %v1082
  %v1085 = vrot.slane %v1075, 4
  %v1086 = vsel %vm131, %v1085, %v1084
  %v1087 = vrot.slane %v1076, 3
  %v1088 = vrot.slane %v1077, 2
  %v1089 = vsel %vm113, %v1088, %v1087
  %v1090 = vrot.slane %v1078, 1
  %v1091 = vsel %vm116, %v1090, %v1089
  %v1092 = vpack.c.b16 %v1091, %v1086
  %v1101 = vunpack.c.l.b16 %v1038
  %v1102 = vunpack.c.l.b16 %v1039
  %v1103 = vunpack.c.l.b16 %v1040
  %v1104 = vunpack.c.l.b16 %v1041
  %v1105 = vunpack.c.l.b16 %v1042
  %v1106 = vunpack.c.l.b16 %v1043
  %v1107 = vunpack.c.l.b16 %v1044
  %v1108 = vunpack.c.l.b16 %v1045
  %v1109 = vpack.c.b16 %v1101, %v1101
  %v1110 = vpack.c.b16 %v1102, %v1102
  %v1111 = vpack.c.b16 %v1103, %v1103
  %v1112 = vpack.c.b16 %v1104, %v1104
  %v1113 = vpack.c.b16 %v1105, %v1105
  %v1114 = vpack.c.b16 %v1106, %v1106
  %v1115 = vpack.c.b16 %v1107, %v1107
  %v1116 = vpack.c.b16 %v1108, %v1108
  %v1117 = vunpack.c.l.b16 %v1109
  %v1118 = vunpack.c.l.b16 %v1110
  %v1119 = vunpack.c.l.b16 %v1111
  %v1120 = vunpack.c.l.b16 %v1112
  %v1121 = vunpack.c.l.b16 %v1113
  %v1122 = vunpack.c.l.b16 %v1114
  %v1123 = vunpack.c.l.b16 %v1115
  %v1124 = vunpack.c.l.b16 %v1116
  %v1125 = vrot.slane %v1117, 1
  %v1126 = vsel %vm122, %v1118, %v1125
  %v1127 = vrot.slane %v1119, 7
  %v1128 = vsel %vm125, %v1127, %v1126
  %v1129 = vrot.slane %v1120, 6
  %v1130 = vsel %vm128, %v1129, %v1128
  %v1131 = vrot.slane %v1121, 5
  %v1132 = vsel %vm131, %v1131, %v1130
  %v1133 = vrot.slane %v1122, 4
  %v1134 = vrot.slane %v1123, 3
  %v1135 = vsel %vm113, %v1134, %v1133
  %v1136 = vrot.slane %v1124, 2
  %v1137 = vsel %vm116, %v1136, %v1135
  %v1138 = vpack.c.b16 %v1137, %v1132
  %1139 = vrot.lane.b32.xlu0 %v1138, 32
  %v1140 = vpop.permute.xlu0 %1139
  %v1142 = vshrl.u32 %v1046, 16
  %v1144 = vrot.slane %v1142, 6
  %v1145 = vshll.u32 %v1046, 16
  %v1147 = vrot.slane %v1145, 7
  %v1148 = vor.u32 %v1144, %v1147
  %1149 = vrot.lane.b32.xlu0 %v1148, 96
  %v1150 = vpop.permute.xlu0 %1149
  %v1153 = vsel %vm186, %v1092, %v1140
  %v1155 = vsel %vm190, %v1153, %v1150
  %v1156 = vshrl.u32 %v1155, 16
  %v1158 = vrot.slane %v1156, 1
  %v1159 = vshll.u32 %v1155, 16
  %v1161 = vrot.slane %v1159, 2
  %v1162 = vor.u32 %v1158, %v1161
  %v1164 = vsel %vm229, %v1162, 0
  %1166 = vmatprep.subr.bf16.mxu0 0
  %1167 = vmatpush1.bf16.msra.mxu0 0
  %1168 = vmatprep.subr.bf16.mxu0 0
  %1169 = vmatpush1.bf16.msra.mxu0 0
  %1170 = vmatprep.subr.bf16.mxu0 0
  %1171 = vmatpush1.bf16.msra.mxu0 %v222
  %1172 = vmatprep.subr.bf16.mxu0 0
  %1173 = vmatpush1.bf16.msra.mxu0 %v221
  %1174 = vmatprep.subr.bf16.mxu0 0
  %1175 = vmatpush1.bf16.msra.mxu0 %v220
  %1176 = vmatprep.subr.bf16.mxu0 0
  %1177 = vmatpush1.bf16.msra.mxu0 %v219
  %1178 = vmatprep.subr.bf16.mxu0 0
  %1179 = vmatpush1.bf16.msra.mxu0 %v218
  %1180 = vmatprep.subr.bf16.mxu0 0
  %1181 = vmatpush1.bf16.msra.mxu0 %v217
  %1182 = vmatprep.subr.bf16.mxu0 0
  %1183 = vmatpush2.bf16.msra.mxu0 0
  %1184 = vmatprep.subr.bf16.mxu0 0
  %1185 = vmatpush2.bf16.msra.mxu0 0
  %1186 = vmatprep.subr.bf16.mxu0 0
  %1187 = vmatpush2.bf16.msra.mxu0 0
  %1188 = vmatprep.subr.bf16.mxu0 0
  %1189 = vmatpush2.bf16.msra.mxu0 0
  %1190 = vmatprep.subr.bf16.mxu0 0
  %1191 = vmatpush2.bf16.msra.mxu0 0
  %1192 = vmatprep.subr.bf16.mxu0 0
  %1193 = vmatpush2.bf16.msra.mxu0 0
  %1194 = vmatprep.subr.bf16.mxu0 0
  %1195 = vmatpush2.bf16.msra.mxu0 0
  %1196 = vmatprep.subr.bf16.mxu0 0
  %1197 = vmatpush2.bf16.msra.mxu0 0
  %1198 = vmatprep.mubr.bf16.mxu0 0
  %1199 = vmatmul.mubr.bf16.gmra.mxu0 %v1164
  %v1200 = vpop.f32.mrf.mxu0
  %v1201 = vadd.f32 %v59, %v1200
  %v1202 = vpop.f32.mrf.mxu0
  %v1203 = vpop.f32.mrf.mxu0
  %v1204 = vpop.f32.mrf.mxu0
  %1205 = vdwg.mxu0
  %v1206 = vxor.u32 %v1201, 2147483648
  %v1207 = vmul.f32 %v1206, 1.442695
  %v1208 = vpow.pop %v1207
  %v1209 = vadd.f32 %v1208, 1.0
  %v1210 = vrcp.pop %v1209
  %v1211 = vmul.f32 1.0, %v1210
  %v1212 = vtanh.pop %v1201
  %v1213 = vmul.f32 %v1211, %v909
  %1215 = vrot.lane.b32.xlu0 %v1212, 64
  %v1216 = vpop.permute.xlu0 %1215
  %v1218 = vmul.f32 %v1211, %v1216
  %1220 = vrot.lane.b32.xlu0 %v1218, 32
  %v1221 = vpop.permute.xlu0 %1220
  %v1223 = vadd.f32 %v1213, %v1221
  %v1224 = vtanh.pop %v1223
  %1226 = vrot.lane.b32.xlu0 %v1224, 64
  %v1227 = vpop.permute.xlu0 %1226
  %v1229 = vmul.f32 %v1211, %v1227
  %v1231 = vcombine.high %v1229, %v1229
  %v1233 = vunpack.c.l.s4 1966171168
  %v1234 = vunpack.c.0.s8 %v1233
  %v1235 = vlaneseq
  %v1236 = vshrl.u32 %v1235, 7
  %v1237 = vsub.s32 %v1234, %v1236
  %v1238 = vrot.slane %v1229, %v1237
  %v1240 = vunpack.c.l.s4 1966171168
  %v1241 = vunpack.c.0.s8 %v1240
  %v1242 = vlaneseq
  %v1243 = vshrl.u32 %v1242, 7
  %v1244 = vsub.s32 %v1241, %v1243
  %v1245 = vrot.slane %v1231, %v1244
  %v1246 = vcombine.high %v1238, %v1238
  %v1247 = vcombine.high %v1245, %v1245
  %v1249 = vunpack.c.l.s4 1966171168
  %v1250 = vunpack.c.0.s8 %v1249
  %v1251 = vlaneseq
  %v1252 = vshrl.u32 %v1251, 7
  %v1253 = vsub.s32 %v1250, %v1252
  %v1254 = vrot.slane %v1238, %v1253
  %v1256 = vunpack.c.l.s4 1966171168
  %v1257 = vunpack.c.0.s8 %v1256
  %v1258 = vlaneseq
  %v1259 = vshrl.u32 %v1258, 7
  %v1260 = vsub.s32 %v1257, %v1259
  %v1261 = vrot.slane %v1245, %v1260
  %v1263 = vunpack.c.l.s4 1966171168
  %v1264 = vunpack.c.0.s8 %v1263
  %v1265 = vlaneseq
  %v1266 = vshrl.u32 %v1265, 7
  %v1267 = vsub.s32 %v1264, %v1266
  %v1268 = vrot.slane %v1246, %v1267
  %v1270 = vunpack.c.l.s4 1966171168
  %v1271 = vunpack.c.0.s8 %v1270
  %v1272 = vlaneseq
  %v1273 = vshrl.u32 %v1272, 7
  %v1274 = vsub.s32 %v1271, %v1273
  %v1275 = vrot.slane %v1247, %v1274
  %v1276 = vcombine.high %v1254, %v1254
  %v1277 = vcombine.high %v1261, %v1261
  %v1278 = vcombine.high %v1268, %v1268
  %v1279 = vcombine.high %v1275, %v1275
  %v1280 = vlaneseq
  %v1281 = vshrl.u32 %v1280, 7
  %v1282 = vsub.s32 0, %v1281
  %v1283 = vrot.slane %v1254, %v1282
  %v1284 = vlaneseq
  %v1285 = vshrl.u32 %v1284, 7
  %v1286 = vsub.s32 0, %v1285
  %v1287 = vrot.slane %v1268, %v1286
  %v1288 = vlaneseq
  %v1289 = vshrl.u32 %v1288, 7
  %v1290 = vsub.s32 0, %v1289
  %v1291 = vrot.slane %v1276, %v1290
  %v1292 = vlaneseq
  %v1293 = vshrl.u32 %v1292, 7
  %v1294 = vsub.s32 0, %v1293
  %v1295 = vrot.slane %v1278, %v1294
  %v1296 = vlaneseq
  %v1297 = vshrl.u32 %v1296, 7
  %v1298 = vsub.s32 0, %v1297
  %v1299 = vrot.slane %v1261, %v1298
  %v1300 = vlaneseq
  %v1301 = vshrl.u32 %v1300, 7
  %v1302 = vsub.s32 0, %v1301
  %v1303 = vrot.slane %v1275, %v1302
  %v1304 = vlaneseq
  %v1305 = vshrl.u32 %v1304, 7
  %v1306 = vsub.s32 0, %v1305
  %v1307 = vrot.slane %v1277, %v1306
  %v1308 = vlaneseq
  %v1309 = vshrl.u32 %v1308, 7
  %v1310 = vsub.s32 0, %v1309
  %v1311 = vrot.slane %v1279, %v1310
  %1312 = vrot.lane.b32.xlu0 %v1283, 32
  %v1313 = vpop.permute.xlu0 %1312
  %1314 = vrot.lane.b32.xlu0 %v1287, 32
  %v1315 = vpop.permute.xlu0 %1314
  %1316 = vrot.lane.b32.xlu0 %v1291, 32
  %v1317 = vpop.permute.xlu0 %1316
  %1318 = vrot.lane.b32.xlu0 %v1295, 32
  %v1319 = vpop.permute.xlu0 %1318
  %1320 = vrot.lane.b32.xlu0 %v1299, 32
  %v1321 = vpop.permute.xlu0 %1320
  %1322 = vrot.lane.b32.xlu0 %v1303, 32
  %v1323 = vpop.permute.xlu0 %1322
  %1324 = vrot.lane.b32.xlu0 %v1307, 32
  %v1325 = vpop.permute.xlu0 %1324
  %1326 = vrot.lane.b32.xlu0 %v1311, 32
  %v1327 = vpop.permute.xlu0 %1326
  %1336 = vst.msk [vmem:[%s4 + $0x3] sm:$0x1] %vm406, %v1313
  %1337 = vst.msk [vmem:[%s4 + $0xb] sm:$0x1] %vm406, %v1315
  %1338 = vst.msk [vmem:[%s4 + $0x13] sm:$0x1] %vm406, %v1317
  %1339 = vst.msk [vmem:[%s4 + $0x1b] sm:$0x1] %vm406, %v1319
  %1340 = vst.msk [vmem:[%s4 + $0x23] sm:$0x1] %vm406, %v1321
  %1341 = vst.msk [vmem:[%s4 + $0x2b] sm:$0x1] %vm406, %v1323
  %1342 = vst.msk [vmem:[%s4 + $0x33] sm:$0x1] %vm406, %v1325
  %1343 = vst.msk [vmem:[%s4 + $0x3b] sm:$0x1] %vm406, %v1327
  %v1344 = vld [vmem:[%s0] sm:$0x4]
  %v1345 = vld [vmem:[%s0 + $0x4] sm:$0x4]
  %v1346 = vld [vmem:[%s0 + $0x8] sm:$0x4]
  %v1347 = vld [vmem:[%s0 + $0xc] sm:$0x4]
  %v1348 = vld [vmem:[%s0 + $0x10] sm:$0x4]
  %v1349 = vld [vmem:[%s0 + $0x14] sm:$0x4]
  %v1350 = vld [vmem:[%s0 + $0x18] sm:$0x4]
  %v1351 = vld [vmem:[%s0 + $0x1c] sm:$0x4]
  %v1352 = vld [vmem:[%s32] sm:$0x2]
  %v1353 = vld [vmem:[%s32 + $0x4] sm:$0x2]
  %v1354 = vld [vmem:[%s32 + $0x8] sm:$0x2]
  %v1355 = vld [vmem:[%s32 + $0xc] sm:$0x2]
  %v1356 = vld [vmem:[%s32 + $0x10] sm:$0x2]
  %v1357 = vld [vmem:[%s32 + $0x14] sm:$0x2]
  %v1358 = vld [vmem:[%s32 + $0x18] sm:$0x2]
  %v1359 = vld [vmem:[%s32 + $0x1c] sm:$0x2]
  %v1360 = vpack.c.bf16 %v1229, %v1229
  %v1369 = vunpack.c.l.b16 %v1344
  %v1370 = vunpack.c.l.b16 %v1345
  %v1371 = vunpack.c.l.b16 %v1346
  %v1372 = vunpack.c.l.b16 %v1347
  %v1373 = vunpack.c.l.b16 %v1348
  %v1374 = vunpack.c.l.b16 %v1349
  %v1375 = vunpack.c.l.b16 %v1350
  %v1376 = vunpack.c.l.b16 %v1351
  %v1377 = vpack.c.b16 %v1369, %v1369
  %v1378 = vpack.c.b16 %v1370, %v1370
  %v1379 = vpack.c.b16 %v1371, %v1371
  %v1380 = vpack.c.b16 %v1372, %v1372
  %v1381 = vpack.c.b16 %v1373, %v1373
  %v1382 = vpack.c.b16 %v1374, %v1374
  %v1383 = vpack.c.b16 %v1375, %v1375
  %v1384 = vpack.c.b16 %v1376, %v1376
  %v1385 = vunpack.c.l.b16 %v1377
  %v1386 = vunpack.c.l.b16 %v1378
  %v1387 = vunpack.c.l.b16 %v1379
  %v1388 = vunpack.c.l.b16 %v1380
  %v1389 = vunpack.c.l.b16 %v1381
  %v1390 = vunpack.c.l.b16 %v1382
  %v1391 = vunpack.c.l.b16 %v1383
  %v1392 = vunpack.c.l.b16 %v1384
  %v1393 = vrot.slane %v1386, 7
  %v1394 = vsel %vm125, %v1393, %v1385
  %v1395 = vrot.slane %v1387, 6
  %v1396 = vsel %vm128, %v1395, %v1394
  %v1397 = vrot.slane %v1388, 5
  %v1398 = vsel %vm131, %v1397, %v1396
  %v1399 = vrot.slane %v1389, 4
  %v1400 = vrot.slane %v1390, 3
  %v1401 = vsel %vm113, %v1400, %v1399
  %v1402 = vrot.slane %v1391, 2
  %v1403 = vsel %vm116, %v1402, %v1401
  %v1404 = vrot.slane %v1392, 1
  %v1405 = vsel %vm119, %v1404, %v1403
  %v1406 = vpack.c.b16 %v1405, %v1398
  %v1415 = vunpack.c.l.b16 %v1352
  %v1416 = vunpack.c.l.b16 %v1353
  %v1417 = vunpack.c.l.b16 %v1354
  %v1418 = vunpack.c.l.b16 %v1355
  %v1419 = vunpack.c.l.b16 %v1356
  %v1420 = vunpack.c.l.b16 %v1357
  %v1421 = vunpack.c.l.b16 %v1358
  %v1422 = vunpack.c.l.b16 %v1359
  %v1423 = vpack.c.b16 %v1415, %v1415
  %v1424 = vpack.c.b16 %v1416, %v1416
  %v1425 = vpack.c.b16 %v1417, %v1417
  %v1426 = vpack.c.b16 %v1418, %v1418
  %v1427 = vpack.c.b16 %v1419, %v1419
  %v1428 = vpack.c.b16 %v1420, %v1420
  %v1429 = vpack.c.b16 %v1421, %v1421
  %v1430 = vpack.c.b16 %v1422, %v1422
  %v1431 = vunpack.c.l.b16 %v1423
  %v1432 = vunpack.c.l.b16 %v1424
  %v1433 = vunpack.c.l.b16 %v1425
  %v1434 = vunpack.c.l.b16 %v1426
  %v1435 = vunpack.c.l.b16 %v1427
  %v1436 = vunpack.c.l.b16 %v1428
  %v1437 = vunpack.c.l.b16 %v1429
  %v1438 = vunpack.c.l.b16 %v1430
  %v1439 = vrot.slane %v1431, 7
  %v1440 = vrot.slane %v1432, 6
  %v1441 = vsel %vm125, %v1440, %v1439
  %v1442 = vrot.slane %v1433, 5
  %v1443 = vsel %vm128, %v1442, %v1441
  %v1444 = vrot.slane %v1434, 4
  %v1445 = vsel %vm131, %v1444, %v1443
  %v1446 = vrot.slane %v1435, 3
  %v1447 = vrot.slane %v1436, 2
  %v1448 = vsel %vm113, %v1447, %v1446
  %v1449 = vrot.slane %v1437, 1
  %v1450 = vsel %vm116, %v1449, %v1448
  %v1451 = vsel %vm119, %v1438, %v1450
  %v1452 = vpack.c.b16 %v1451, %v1445
  %1453 = vrot.lane.b32.xlu0 %v1452, 32
  %v1454 = vpop.permute.xlu0 %1453
  %v1456 = vrot.slane %v1360, 6
  %1457 = vrot.lane.b32.xlu0 %v1456, 96
  %v1458 = vpop.permute.xlu0 %1457
  %v1461 = vsel %vm186, %v1406, %v1454
  %v1463 = vsel %vm190, %v1461, %v1458
  %v1465 = vrot.slane %v1463, 2
  %v1467 = vsel %vm229, %v1465, 0
  %1469 = vmatprep.subr.bf16.mxu0 0
  %1470 = vmatpush1.bf16.msra.mxu0 0
  %1471 = vmatprep.subr.bf16.mxu0 0
  %1472 = vmatpush1.bf16.msra.mxu0 0
  %1473 = vmatprep.subr.bf16.mxu0 0
  %1474 = vmatpush1.bf16.msra.mxu0 %v222
  %1475 = vmatprep.subr.bf16.mxu0 0
  %1476 = vmatpush1.bf16.msra.mxu0 %v221
  %1477 = vmatprep.subr.bf16.mxu0 0
  %1478 = vmatpush1.bf16.msra.mxu0 %v220
  %1479 = vmatprep.subr.bf16.mxu0 0
  %1480 = vmatpush1.bf16.msra.mxu0 %v219
  %1481 = vmatprep.subr.bf16.mxu0 0
  %1482 = vmatpush1.bf16.msra.mxu0 %v218
  %1483 = vmatprep.subr.bf16.mxu0 0
  %1484 = vmatpush1.bf16.msra.mxu0 %v217
  %1485 = vmatprep.subr.bf16.mxu0 0
  %1486 = vmatpush2.bf16.msra.mxu0 0
  %1487 = vmatprep.subr.bf16.mxu0 0
  %1488 = vmatpush2.bf16.msra.mxu0 0
  %1489 = vmatprep.subr.bf16.mxu0 0
  %1490 = vmatpush2.bf16.msra.mxu0 0
  %1491 = vmatprep.subr.bf16.mxu0 0
  %1492 = vmatpush2.bf16.msra.mxu0 0
  %1493 = vmatprep.subr.bf16.mxu0 0
  %1494 = vmatpush2.bf16.msra.mxu0 0
  %1495 = vmatprep.subr.bf16.mxu0 0
  %1496 = vmatpush2.bf16.msra.mxu0 0
  %1497 = vmatprep.subr.bf16.mxu0 0
  %1498 = vmatpush2.bf16.msra.mxu0 0
  %1499 = vmatprep.subr.bf16.mxu0 0
  %1500 = vmatpush2.bf16.msra.mxu0 0
  %1501 = vmatprep.mubr.bf16.mxu0 0
  %1502 = vmatmul.mubr.bf16.gmra.mxu0 %v1467
  %v1503 = vpop.f32.mrf.mxu0
  %v1504 = vadd.f32 %v59, %v1503
  %v1505 = vpop.f32.mrf.mxu0
  %v1506 = vpop.f32.mrf.mxu0
  %v1507 = vpop.f32.mrf.mxu0
  %1508 = vdwg.mxu0
  %v1509 = vxor.u32 %v1504, 2147483648
  %v1510 = vmul.f32 %v1509, 1.442695
  %v1511 = vpow.pop %v1510
  %v1512 = vadd.f32 %v1511, 1.0
  %v1513 = vrcp.pop %v1512
  %v1514 = vmul.f32 1.0, %v1513
  %v1515 = vtanh.pop %v1504
  %v1516 = vmul.f32 %v1514, %v1223
  %1518 = vrot.lane.b32.xlu0 %v1515, 64
  %v1519 = vpop.permute.xlu0 %1518
  %v1521 = vmul.f32 %v1514, %v1519
  %1523 = vrot.lane.b32.xlu0 %v1521, 32
  %v1524 = vpop.permute.xlu0 %1523
  %v1526 = vadd.f32 %v1516, %v1524
  %v1527 = vtanh.pop %v1526
  %1529 = vrot.lane.b32.xlu0 %v1527, 64
  %v1530 = vpop.permute.xlu0 %1529
  %v1532 = vmul.f32 %v1514, %v1530
  %v1534 = vcombine.high %v1532, %v1532
  %v1536 = vunpack.c.l.s4 1966171168
  %v1537 = vunpack.c.0.s8 %v1536
  %v1538 = vlaneseq
  %v1539 = vshrl.u32 %v1538, 7
  %v1540 = vsub.s32 %v1537, %v1539
  %v1541 = vrot.slane %v1532, %v1540
  %v1543 = vunpack.c.l.s4 1966171168
  %v1544 = vunpack.c.0.s8 %v1543
  %v1545 = vlaneseq
  %v1546 = vshrl.u32 %v1545, 7
  %v1547 = vsub.s32 %v1544, %v1546
  %v1548 = vrot.slane %v1534, %v1547
  %v1549 = vcombine.high %v1541, %v1541
  %v1550 = vcombine.high %v1548, %v1548
  %v1552 = vunpack.c.l.s4 1966171168
  %v1553 = vunpack.c.0.s8 %v1552
  %v1554 = vlaneseq
  %v1555 = vshrl.u32 %v1554, 7
  %v1556 = vsub.s32 %v1553, %v1555
  %v1557 = vrot.slane %v1541, %v1556
  %v1559 = vunpack.c.l.s4 1966171168
  %v1560 = vunpack.c.0.s8 %v1559
  %v1561 = vlaneseq
  %v1562 = vshrl.u32 %v1561, 7
  %v1563 = vsub.s32 %v1560, %v1562
  %v1564 = vrot.slane %v1548, %v1563
  %v1566 = vunpack.c.l.s4 1966171168
  %v1567 = vunpack.c.0.s8 %v1566
  %v1568 = vlaneseq
  %v1569 = vshrl.u32 %v1568, 7
  %v1570 = vsub.s32 %v1567, %v1569
  %v1571 = vrot.slane %v1549, %v1570
  %v1573 = vunpack.c.l.s4 1966171168
  %v1574 = vunpack.c.0.s8 %v1573
  %v1575 = vlaneseq
  %v1576 = vshrl.u32 %v1575, 7
  %v1577 = vsub.s32 %v1574, %v1576
  %v1578 = vrot.slane %v1550, %v1577
  %v1579 = vcombine.high %v1557, %v1557
  %v1580 = vcombine.high %v1564, %v1564
  %v1581 = vcombine.high %v1571, %v1571
  %v1582 = vcombine.high %v1578, %v1578
  %v1583 = vlaneseq
  %v1584 = vshrl.u32 %v1583, 7
  %v1585 = vsub.s32 0, %v1584
  %v1586 = vrot.slane %v1557, %v1585
  %v1587 = vlaneseq
  %v1588 = vshrl.u32 %v1587, 7
  %v1589 = vsub.s32 0, %v1588
  %v1590 = vrot.slane %v1571, %v1589
  %v1591 = vlaneseq
  %v1592 = vshrl.u32 %v1591, 7
  %v1593 = vsub.s32 0, %v1592
  %v1594 = vrot.slane %v1579, %v1593
  %v1595 = vlaneseq
  %v1596 = vshrl.u32 %v1595, 7
  %v1597 = vsub.s32 0, %v1596
  %v1598 = vrot.slane %v1581, %v1597
  %v1599 = vlaneseq
  %v1600 = vshrl.u32 %v1599, 7
  %v1601 = vsub.s32 0, %v1600
  %v1602 = vrot.slane %v1564, %v1601
  %v1603 = vlaneseq
  %v1604 = vshrl.u32 %v1603, 7
  %v1605 = vsub.s32 0, %v1604
  %v1606 = vrot.slane %v1578, %v1605
  %v1607 = vlaneseq
  %v1608 = vshrl.u32 %v1607, 7
  %v1609 = vsub.s32 0, %v1608
  %v1610 = vrot.slane %v1580, %v1609
  %v1611 = vlaneseq
  %v1612 = vshrl.u32 %v1611, 7
  %v1613 = vsub.s32 0, %v1612
  %v1614 = vrot.slane %v1582, %v1613
  %1615 = vrot.lane.b32.xlu0 %v1586, 32
  %v1616 = vpop.permute.xlu0 %1615
  %1617 = vrot.lane.b32.xlu0 %v1590, 32
  %v1618 = vpop.permute.xlu0 %1617
  %1619 = vrot.lane.b32.xlu0 %v1594, 32
  %v1620 = vpop.permute.xlu0 %1619
  %1621 = vrot.lane.b32.xlu0 %v1598, 32
  %v1622 = vpop.permute.xlu0 %1621
  %1623 = vrot.lane.b32.xlu0 %v1602, 32
  %v1624 = vpop.permute.xlu0 %1623
  %1625 = vrot.lane.b32.xlu0 %v1606, 32
  %v1626 = vpop.permute.xlu0 %1625
  %1627 = vrot.lane.b32.xlu0 %v1610, 32
  %v1628 = vpop.permute.xlu0 %1627
  %1629 = vrot.lane.b32.xlu0 %v1614, 32
  %v1630 = vpop.permute.xlu0 %1629
  %1639 = vst.msk [vmem:[%s4 + $0x4] sm:$0x1] %vm406, %v1616
  %1640 = vst.msk [vmem:[%s4 + $0xc] sm:$0x1] %vm406, %v1618
  %1641 = vst.msk [vmem:[%s4 + $0x14] sm:$0x1] %vm406, %v1620
  %1642 = vst.msk [vmem:[%s4 + $0x1c] sm:$0x1] %vm406, %v1622
  %1643 = vst.msk [vmem:[%s4 + $0x24] sm:$0x1] %vm406, %v1624
  %1644 = vst.msk [vmem:[%s4 + $0x2c] sm:$0x1] %vm406, %v1626
  %1645 = vst.msk [vmem:[%s4 + $0x34] sm:$0x1] %vm406, %v1628
  %1646 = vst.msk [vmem:[%s4 + $0x3c] sm:$0x1] %vm406, %v1630
  %v1647 = vld [vmem:[%s0] sm:$0x4]
  %v1648 = vld [vmem:[%s0 + $0x4] sm:$0x4]
  %v1649 = vld [vmem:[%s0 + $0x8] sm:$0x4]
  %v1650 = vld [vmem:[%s0 + $0xc] sm:$0x4]
  %v1651 = vld [vmem:[%s0 + $0x10] sm:$0x4]
  %v1652 = vld [vmem:[%s0 + $0x14] sm:$0x4]
  %v1653 = vld [vmem:[%s0 + $0x18] sm:$0x4]
  %v1654 = vld [vmem:[%s0 + $0x1c] sm:$0x4]
  %v1655 = vld [vmem:[%s32] sm:$0x2]
  %v1656 = vld [vmem:[%s32 + $0x4] sm:$0x2]
  %v1657 = vld [vmem:[%s32 + $0x8] sm:$0x2]
  %v1658 = vld [vmem:[%s32 + $0xc] sm:$0x2]
  %v1659 = vld [vmem:[%s32 + $0x10] sm:$0x2]
  %v1660 = vld [vmem:[%s32 + $0x14] sm:$0x2]
  %v1661 = vld [vmem:[%s32 + $0x18] sm:$0x2]
  %v1662 = vld [vmem:[%s32 + $0x1c] sm:$0x2]
  %v1663 = vpack.c.bf16 %v1532, %v1532
  %v1672 = vunpack.c.l.b16 %v1647
  %v1673 = vunpack.c.l.b16 %v1648
  %v1674 = vunpack.c.l.b16 %v1649
  %v1675 = vunpack.c.l.b16 %v1650
  %v1676 = vunpack.c.l.b16 %v1651
  %v1677 = vunpack.c.l.b16 %v1652
  %v1678 = vunpack.c.l.b16 %v1653
  %v1679 = vunpack.c.l.b16 %v1654
  %v1680 = vpack.c.b16 %v1672, %v1672
  %v1681 = vpack.c.b16 %v1673, %v1673
  %v1682 = vpack.c.b16 %v1674, %v1674
  %v1683 = vpack.c.b16 %v1675, %v1675
  %v1684 = vpack.c.b16 %v1676, %v1676
  %v1685 = vpack.c.b16 %v1677, %v1677
  %v1686 = vpack.c.b16 %v1678, %v1678
  %v1687 = vpack.c.b16 %v1679, %v1679
  %v1688 = vunpack.c.l.b16 %v1680
  %v1689 = vunpack.c.l.b16 %v1681
  %v1690 = vunpack.c.l.b16 %v1682
  %v1691 = vunpack.c.l.b16 %v1683
  %v1692 = vunpack.c.l.b16 %v1684
  %v1693 = vunpack.c.l.b16 %v1685
  %v1694 = vunpack.c.l.b16 %v1686
  %v1695 = vunpack.c.l.b16 %v1687
  %v1696 = vrot.slane %v1689, 7
  %v1697 = vsel %vm128, %v1696, %v1688
  %v1698 = vrot.slane %v1690, 6
  %v1699 = vsel %vm131, %v1698, %v1697
  %v1700 = vrot.slane %v1691, 5
  %v1701 = vrot.slane %v1692, 4
  %v1702 = vsel %vm113, %v1701, %v1700
  %v1703 = vrot.slane %v1693, 3
  %v1704 = vsel %vm116, %v1703, %v1702
  %v1705 = vrot.slane %v1694, 2
  %v1706 = vsel %vm119, %v1705, %v1704
  %v1707 = vrot.slane %v1695, 1
  %v1708 = vsel %vm122, %v1707, %v1706
  %v1709 = vpack.c.b16 %v1708, %v1699
  %v1718 = vunpack.c.l.b16 %v1655
  %v1719 = vunpack.c.l.b16 %v1656
  %v1720 = vunpack.c.l.b16 %v1657
  %v1721 = vunpack.c.l.b16 %v1658
  %v1722 = vunpack.c.l.b16 %v1659
  %v1723 = vunpack.c.l.b16 %v1660
  %v1724 = vunpack.c.l.b16 %v1661
  %v1725 = vunpack.c.l.b16 %v1662
  %v1726 = vpack.c.b16 %v1718, %v1718
  %v1727 = vpack.c.b16 %v1719, %v1719
  %v1728 = vpack.c.b16 %v1720, %v1720
  %v1729 = vpack.c.b16 %v1721, %v1721
  %v1730 = vpack.c.b16 %v1722, %v1722
  %v1731 = vpack.c.b16 %v1723, %v1723
  %v1732 = vpack.c.b16 %v1724, %v1724
  %v1733 = vpack.c.b16 %v1725, %v1725
  %v1734 = vunpack.c.l.b16 %v1726
  %v1735 = vunpack.c.l.b16 %v1727
  %v1736 = vunpack.c.l.b16 %v1728
  %v1737 = vunpack.c.l.b16 %v1729
  %v1738 = vunpack.c.l.b16 %v1730
  %v1739 = vunpack.c.l.b16 %v1731
  %v1740 = vunpack.c.l.b16 %v1732
  %v1741 = vunpack.c.l.b16 %v1733
  %v1742 = vrot.slane %v1734, 5
  %v1743 = vrot.slane %v1735, 4
  %v1744 = vsel %vm128, %v1743, %v1742
  %v1745 = vrot.slane %v1736, 3
  %v1746 = vsel %vm131, %v1745, %v1744
  %v1747 = vrot.slane %v1737, 2
  %v1748 = vrot.slane %v1738, 1
  %v1749 = vsel %vm113, %v1748, %v1747
  %v1750 = vsel %vm116, %v1739, %v1749
  %v1751 = vrot.slane %v1740, 7
  %v1752 = vsel %vm119, %v1751, %v1750
  %v1753 = vrot.slane %v1741, 6
  %v1754 = vsel %vm122, %v1753, %v1752
  %v1755 = vpack.c.b16 %v1754, %v1746
  %1756 = vrot.lane.b32.xlu0 %v1755, 32
  %v1757 = vpop.permute.xlu0 %1756
  %v1759 = vshrl.u32 %v1663, 16
  %v1761 = vrot.slane %v1759, 5
  %v1762 = vshll.u32 %v1663, 16
  %v1764 = vrot.slane %v1762, 6
  %v1765 = vor.u32 %v1761, %v1764
  %1766 = vrot.lane.b32.xlu0 %v1765, 96
  %v1767 = vpop.permute.xlu0 %1766
  %v1770 = vsel %vm186, %v1709, %v1757
  %v1772 = vsel %vm190, %v1770, %v1767
  %v1773 = vshrl.u32 %v1772, 16
  %v1775 = vrot.slane %v1773, 2
  %v1776 = vshll.u32 %v1772, 16
  %v1778 = vrot.slane %v1776, 3
  %v1779 = vor.u32 %v1775, %v1778
  %v1781 = vsel %vm229, %v1779, 0
  %1783 = vmatprep.subr.bf16.mxu0 0
  %1784 = vmatpush1.bf16.msra.mxu0 0
  %1785 = vmatprep.subr.bf16.mxu0 0
  %1786 = vmatpush1.bf16.msra.mxu0 0
  %1787 = vmatprep.subr.bf16.mxu0 0
  %1788 = vmatpush1.bf16.msra.mxu0 %v222
  %1789 = vmatprep.subr.bf16.mxu0 0
  %1790 = vmatpush1.bf16.msra.mxu0 %v221
  %1791 = vmatprep.subr.bf16.mxu0 0
  %1792 = vmatpush1.bf16.msra.mxu0 %v220
  %1793 = vmatprep.subr.bf16.mxu0 0
  %1794 = vmatpush1.bf16.msra.mxu0 %v219
  %1795 = vmatprep.subr.bf16.mxu0 0
  %1796 = vmatpush1.bf16.msra.mxu0 %v218
  %1797 = vmatprep.subr.bf16.mxu0 0
  %1798 = vmatpush1.bf16.msra.mxu0 %v217
  %1799 = vmatprep.subr.bf16.mxu0 0
  %1800 = vmatpush2.bf16.msra.mxu0 0
  %1801 = vmatprep.subr.bf16.mxu0 0
  %1802 = vmatpush2.bf16.msra.mxu0 0
  %1803 = vmatprep.subr.bf16.mxu0 0
  %1804 = vmatpush2.bf16.msra.mxu0 0
  %1805 = vmatprep.subr.bf16.mxu0 0
  %1806 = vmatpush2.bf16.msra.mxu0 0
  %1807 = vmatprep.subr.bf16.mxu0 0
  %1808 = vmatpush2.bf16.msra.mxu0 0
  %1809 = vmatprep.subr.bf16.mxu0 0
  %1810 = vmatpush2.bf16.msra.mxu0 0
  %1811 = vmatprep.subr.bf16.mxu0 0
  %1812 = vmatpush2.bf16.msra.mxu0 0
  %1813 = vmatprep.subr.bf16.mxu0 0
  %1814 = vmatpush2.bf16.msra.mxu0 0
  %1815 = vmatprep.mubr.bf16.mxu0 0
  %1816 = vmatmul.mubr.bf16.gmra.mxu0 %v1781
  %v1817 = vpop.f32.mrf.mxu0
  %v1818 = vadd.f32 %v59, %v1817
  %v1819 = vpop.f32.mrf.mxu0
  %v1820 = vpop.f32.mrf.mxu0
  %v1821 = vpop.f32.mrf.mxu0
  %1822 = vdwg.mxu0
  %v1823 = vxor.u32 %v1818, 2147483648
  %v1824 = vmul.f32 %v1823, 1.442695
  %v1825 = vpow.pop %v1824
  %v1826 = vadd.f32 %v1825, 1.0
  %v1827 = vrcp.pop %v1826
  %v1828 = vmul.f32 1.0, %v1827
  %v1829 = vtanh.pop %v1818
  %v1830 = vmul.f32 %v1828, %v1526
  %1832 = vrot.lane.b32.xlu0 %v1829, 64
  %v1833 = vpop.permute.xlu0 %1832
  %v1835 = vmul.f32 %v1828, %v1833
  %1837 = vrot.lane.b32.xlu0 %v1835, 32
  %v1838 = vpop.permute.xlu0 %1837
  %v1840 = vadd.f32 %v1830, %v1838
  %v1841 = vtanh.pop %v1840
  %1843 = vrot.lane.b32.xlu0 %v1841, 64
  %v1844 = vpop.permute.xlu0 %1843
  %v1846 = vmul.f32 %v1828, %v1844
  %v1848 = vcombine.high %v1846, %v1846
  %v1850 = vunpack.c.l.s4 1966171168
  %v1851 = vunpack.c.0.s8 %v1850
  %v1852 = vlaneseq
  %v1853 = vshrl.u32 %v1852, 7
  %v1854 = vsub.s32 %v1851, %v1853
  %v1855 = vrot.slane %v1846, %v1854
  %v1857 = vunpack.c.l.s4 1966171168
  %v1858 = vunpack.c.0.s8 %v1857
  %v1859 = vlaneseq
  %v1860 = vshrl.u32 %v1859, 7
  %v1861 = vsub.s32 %v1858, %v1860
  %v1862 = vrot.slane %v1848, %v1861
  %v1863 = vcombine.high %v1855, %v1855
  %v1864 = vcombine.high %v1862, %v1862
  %v1866 = vunpack.c.l.s4 1966171168
  %v1867 = vunpack.c.0.s8 %v1866
  %v1868 = vlaneseq
  %v1869 = vshrl.u32 %v1868, 7
  %v1870 = vsub.s32 %v1867, %v1869
  %v1871 = vrot.slane %v1855, %v1870
  %v1873 = vunpack.c.l.s4 1966171168
  %v1874 = vunpack.c.0.s8 %v1873
  %v1875 = vlaneseq
  %v1876 = vshrl.u32 %v1875, 7
  %v1877 = vsub.s32 %v1874, %v1876
  %v1878 = vrot.slane %v1862, %v1877
  %v1880 = vunpack.c.l.s4 1966171168
  %v1881 = vunpack.c.0.s8 %v1880
  %v1882 = vlaneseq
  %v1883 = vshrl.u32 %v1882, 7
  %v1884 = vsub.s32 %v1881, %v1883
  %v1885 = vrot.slane %v1863, %v1884
  %v1887 = vunpack.c.l.s4 1966171168
  %v1888 = vunpack.c.0.s8 %v1887
  %v1889 = vlaneseq
  %v1890 = vshrl.u32 %v1889, 7
  %v1891 = vsub.s32 %v1888, %v1890
  %v1892 = vrot.slane %v1864, %v1891
  %v1893 = vcombine.high %v1871, %v1871
  %v1894 = vcombine.high %v1878, %v1878
  %v1895 = vcombine.high %v1885, %v1885
  %v1896 = vcombine.high %v1892, %v1892
  %v1897 = vlaneseq
  %v1898 = vshrl.u32 %v1897, 7
  %v1899 = vsub.s32 0, %v1898
  %v1900 = vrot.slane %v1871, %v1899
  %v1901 = vlaneseq
  %v1902 = vshrl.u32 %v1901, 7
  %v1903 = vsub.s32 0, %v1902
  %v1904 = vrot.slane %v1885, %v1903
  %v1905 = vlaneseq
  %v1906 = vshrl.u32 %v1905, 7
  %v1907 = vsub.s32 0, %v1906
  %v1908 = vrot.slane %v1893, %v1907
  %v1909 = vlaneseq
  %v1910 = vshrl.u32 %v1909, 7
  %v1911 = vsub.s32 0, %v1910
  %v1912 = vrot.slane %v1895, %v1911
  %v1913 = vlaneseq
  %v1914 = vshrl.u32 %v1913, 7
  %v1915 = vsub.s32 0, %v1914
  %v1916 = vrot.slane %v1878, %v1915
  %v1917 = vlaneseq
  %v1918 = vshrl.u32 %v1917, 7
  %v1919 = vsub.s32 0, %v1918
  %v1920 = vrot.slane %v1892, %v1919
  %v1921 = vlaneseq
  %v1922 = vshrl.u32 %v1921, 7
  %v1923 = vsub.s32 0, %v1922
  %v1924 = vrot.slane %v1894, %v1923
  %v1925 = vlaneseq
  %v1926 = vshrl.u32 %v1925, 7
  %v1927 = vsub.s32 0, %v1926
  %v1928 = vrot.slane %v1896, %v1927
  %1929 = vrot.lane.b32.xlu0 %v1900, 32
  %v1930 = vpop.permute.xlu0 %1929
  %1931 = vrot.lane.b32.xlu0 %v1904, 32
  %v1932 = vpop.permute.xlu0 %1931
  %1933 = vrot.lane.b32.xlu0 %v1908, 32
  %v1934 = vpop.permute.xlu0 %1933
  %1935 = vrot.lane.b32.xlu0 %v1912, 32
  %v1936 = vpop.permute.xlu0 %1935
  %1937 = vrot.lane.b32.xlu0 %v1916, 32
  %v1938 = vpop.permute.xlu0 %1937
  %1939 = vrot.lane.b32.xlu0 %v1920, 32
  %v1940 = vpop.permute.xlu0 %1939
  %1941 = vrot.lane.b32.xlu0 %v1924, 32
  %v1942 = vpop.permute.xlu0 %1941
  %1943 = vrot.lane.b32.xlu0 %v1928, 32
  %v1944 = vpop.permute.xlu0 %1943
  %1953 = vst.msk [vmem:[%s4 + $0x5] sm:$0x1] %vm406, %v1930
  %1954 = vst.msk [vmem:[%s4 + $0xd] sm:$0x1] %vm406, %v1932
  %1955 = vst.msk [vmem:[%s4 + $0x15] sm:$0x1] %vm406, %v1934
  %1956 = vst.msk [vmem:[%s4 + $0x1d] sm:$0x1] %vm406, %v1936
  %1957 = vst.msk [vmem:[%s4 + $0x25] sm:$0x1] %vm406, %v1938
  %1958 = vst.msk [vmem:[%s4 + $0x2d] sm:$0x1] %vm406, %v1940
  %1959 = vst.msk [vmem:[%s4 + $0x35] sm:$0x1] %vm406, %v1942
  %1960 = vst.msk [vmem:[%s4 + $0x3d] sm:$0x1] %vm406, %v1944
  %v1961 = vld [vmem:[%s0] sm:$0x8]
  %v1962 = vld [vmem:[%s0 + $0x4] sm:$0x8]
  %v1963 = vld [vmem:[%s0 + $0x8] sm:$0x8]
  %v1964 = vld [vmem:[%s0 + $0xc] sm:$0x8]
  %v1965 = vld [vmem:[%s0 + $0x10] sm:$0x8]
  %v1966 = vld [vmem:[%s0 + $0x14] sm:$0x8]
  %v1967 = vld [vmem:[%s0 + $0x18] sm:$0x8]
  %v1968 = vld [vmem:[%s0 + $0x1c] sm:$0x8]
  %v1969 = vld [vmem:[%s32] sm:$0x1]
  %v1970 = vld [vmem:[%s32 + $0x4] sm:$0x1]
  %v1971 = vld [vmem:[%s32 + $0x8] sm:$0x1]
  %v1972 = vld [vmem:[%s32 + $0xc] sm:$0x1]
  %v1973 = vld [vmem:[%s32 + $0x10] sm:$0x1]
  %v1974 = vld [vmem:[%s32 + $0x14] sm:$0x1]
  %v1975 = vld [vmem:[%s32 + $0x18] sm:$0x1]
  %v1976 = vld [vmem:[%s32 + $0x1c] sm:$0x1]
  %v1977 = vpack.c.bf16 %v1846, %v1846
  %v1986 = vunpack.c.l.b16 %v1961
  %v1987 = vunpack.c.l.b16 %v1962
  %v1988 = vunpack.c.l.b16 %v1963
  %v1989 = vunpack.c.l.b16 %v1964
  %v1990 = vunpack.c.l.b16 %v1965
  %v1991 = vunpack.c.l.b16 %v1966
  %v1992 = vunpack.c.l.b16 %v1967
  %v1993 = vunpack.c.l.b16 %v1968
  %v1994 = vpack.c.b16 %v1986, %v1986
  %v1995 = vpack.c.b16 %v1987, %v1987
  %v1996 = vpack.c.b16 %v1988, %v1988
  %v1997 = vpack.c.b16 %v1989, %v1989
  %v1998 = vpack.c.b16 %v1990, %v1990
  %v1999 = vpack.c.b16 %v1991, %v1991
  %v2000 = vpack.c.b16 %v1992, %v1992
  %v2001 = vpack.c.b16 %v1993, %v1993
  %v2002 = vunpack.c.l.b16 %v1994
  %v2003 = vunpack.c.l.b16 %v1995
  %v2004 = vunpack.c.l.b16 %v1996
  %v2005 = vunpack.c.l.b16 %v1997
  %v2006 = vunpack.c.l.b16 %v1998
  %v2007 = vunpack.c.l.b16 %v1999
  %v2008 = vunpack.c.l.b16 %v2000
  %v2009 = vunpack.c.l.b16 %v2001
  %v2010 = vrot.slane %v2003, 7
  %v2011 = vsel %vm131, %v2010, %v2002
  %v2012 = vrot.slane %v2004, 6
  %v2013 = vrot.slane %v2005, 5
  %v2014 = vsel %vm113, %v2013, %v2012
  %v2015 = vrot.slane %v2006, 4
  %v2016 = vsel %vm116, %v2015, %v2014
  %v2017 = vrot.slane %v2007, 3
  %v2018 = vsel %vm119, %v2017, %v2016
  %v2019 = vrot.slane %v2008, 2
  %v2020 = vsel %vm122, %v2019, %v2018
  %v2021 = vrot.slane %v2009, 1
  %v2022 = vsel %vm125, %v2021, %v2020
  %v2023 = vpack.c.b16 %v2022, %v2011
  %v2032 = vunpack.c.l.b16 %v1969
  %v2033 = vunpack.c.l.b16 %v1970
  %v2034 = vunpack.c.l.b16 %v1971
  %v2035 = vunpack.c.l.b16 %v1972
  %v2036 = vunpack.c.l.b16 %v1973
  %v2037 = vunpack.c.l.b16 %v1974
  %v2038 = vunpack.c.l.b16 %v1975
  %v2039 = vunpack.c.l.b16 %v1976
  %v2040 = vpack.c.b16 %v2032, %v2032
  %v2041 = vpack.c.b16 %v2033, %v2033
  %v2042 = vpack.c.b16 %v2034, %v2034
  %v2043 = vpack.c.b16 %v2035, %v2035
  %v2044 = vpack.c.b16 %v2036, %v2036
  %v2045 = vpack.c.b16 %v2037, %v2037
  %v2046 = vpack.c.b16 %v2038, %v2038
  %v2047 = vpack.c.b16 %v2039, %v2039
  %v2048 = vunpack.c.l.b16 %v2040
  %v2049 = vunpack.c.l.b16 %v2041
  %v2050 = vunpack.c.l.b16 %v2042
  %v2051 = vunpack.c.l.b16 %v2043
  %v2052 = vunpack.c.l.b16 %v2044
  %v2053 = vunpack.c.l.b16 %v2045
  %v2054 = vunpack.c.l.b16 %v2046
  %v2055 = vunpack.c.l.b16 %v2047
  %v2056 = vrot.slane %v2048, 3
  %v2057 = vrot.slane %v2049, 2
  %v2058 = vsel %vm131, %v2057, %v2056
  %v2059 = vrot.slane %v2050, 1
  %v2060 = vsel %vm113, %v2051, %v2059
  %v2061 = vrot.slane %v2052, 7
  %v2062 = vsel %vm116, %v2061, %v2060
  %v2063 = vrot.slane %v2053, 6
  %v2064 = vsel %vm119, %v2063, %v2062
  %v2065 = vrot.slane %v2054, 5
  %v2066 = vsel %vm122, %v2065, %v2064
  %v2067 = vrot.slane %v2055, 4
  %v2068 = vsel %vm125, %v2067, %v2066
  %v2069 = vpack.c.b16 %v2068, %v2058
  %2070 = vrot.lane.b32.xlu0 %v2069, 32
  %v2071 = vpop.permute.xlu0 %2070
  %v2073 = vrot.slane %v1977, 5
  %2074 = vrot.lane.b32.xlu0 %v2073, 96
  %v2075 = vpop.permute.xlu0 %2074
  %v2078 = vsel %vm186, %v2023, %v2071
  %v2080 = vsel %vm190, %v2078, %v2075
  %v2082 = vrot.slane %v2080, 3
  %v2084 = vsel %vm229, %v2082, 0
  %2086 = vmatprep.subr.bf16.mxu0 0
  %2087 = vmatpush1.bf16.msra.mxu0 0
  %2088 = vmatprep.subr.bf16.mxu0 0
  %2089 = vmatpush1.bf16.msra.mxu0 0
  %2090 = vmatprep.subr.bf16.mxu0 0
  %2091 = vmatpush1.bf16.msra.mxu0 %v222
  %2092 = vmatprep.subr.bf16.mxu0 0
  %2093 = vmatpush1.bf16.msra.mxu0 %v221
  %2094 = vmatprep.subr.bf16.mxu0 0
  %2095 = vmatpush1.bf16.msra.mxu0 %v220
  %2096 = vmatprep.subr.bf16.mxu0 0
  %2097 = vmatpush1.bf16.msra.mxu0 %v219
  %2098 = vmatprep.subr.bf16.mxu0 0
  %2099 = vmatpush1.bf16.msra.mxu0 %v218
  %2100 = vmatprep.subr.bf16.mxu0 0
  %2101 = vmatpush1.bf16.msra.mxu0 %v217
  %2102 = vmatprep.subr.bf16.mxu0 0
  %2103 = vmatpush2.bf16.msra.mxu0 0
  %2104 = vmatprep.subr.bf16.mxu0 0
  %2105 = vmatpush2.bf16.msra.mxu0 0
  %2106 = vmatprep.subr.bf16.mxu0 0
  %2107 = vmatpush2.bf16.msra.mxu0 0
  %2108 = vmatprep.subr.bf16.mxu0 0
  %2109 = vmatpush2.bf16.msra.mxu0 0
  %2110 = vmatprep.subr.bf16.mxu0 0
  %2111 = vmatpush2.bf16.msra.mxu0 0
  %2112 = vmatprep.subr.bf16.mxu0 0
  %2113 = vmatpush2.bf16.msra.mxu0 0
  %2114 = vmatprep.subr.bf16.mxu0 0
  %2115 = vmatpush2.bf16.msra.mxu0 0
  %2116 = vmatprep.subr.bf16.mxu0 0
  %2117 = vmatpush2.bf16.msra.mxu0 0
  %2118 = vmatprep.mubr.bf16.mxu0 0
  %2119 = vmatmul.mubr.bf16.gmra.mxu0 %v2084
  %v2120 = vpop.f32.mrf.mxu0
  %v2121 = vadd.f32 %v59, %v2120
  %v2122 = vpop.f32.mrf.mxu0
  %v2123 = vpop.f32.mrf.mxu0
  %v2124 = vpop.f32.mrf.mxu0
  %2125 = vdwg.mxu0
  %v2126 = vxor.u32 %v2121, 2147483648
  %v2127 = vmul.f32 %v2126, 1.442695
  %v2128 = vpow.pop %v2127
  %v2129 = vadd.f32 %v2128, 1.0
  %v2130 = vrcp.pop %v2129
  %v2131 = vmul.f32 1.0, %v2130
  %v2132 = vtanh.pop %v2121
  %v2133 = vmul.f32 %v2131, %v1840
  %2135 = vrot.lane.b32.xlu0 %v2132, 64
  %v2136 = vpop.permute.xlu0 %2135
  %v2138 = vmul.f32 %v2131, %v2136
  %2140 = vrot.lane.b32.xlu0 %v2138, 32
  %v2141 = vpop.permute.xlu0 %2140
  %v2143 = vadd.f32 %v2133, %v2141
  %v2144 = vtanh.pop %v2143
  %2146 = vrot.lane.b32.xlu0 %v2144, 64
  %v2147 = vpop.permute.xlu0 %2146
  %v2149 = vmul.f32 %v2131, %v2147
  %v2151 = vcombine.high %v2149, %v2149
  %v2153 = vunpack.c.l.s4 1966171168
  %v2154 = vunpack.c.0.s8 %v2153
  %v2155 = vlaneseq
  %v2156 = vshrl.u32 %v2155, 7
  %v2157 = vsub.s32 %v2154, %v2156
  %v2158 = vrot.slane %v2149, %v2157
  %v2160 = vunpack.c.l.s4 1966171168
  %v2161 = vunpack.c.0.s8 %v2160
  %v2162 = vlaneseq
  %v2163 = vshrl.u32 %v2162, 7
  %v2164 = vsub.s32 %v2161, %v2163
  %v2165 = vrot.slane %v2151, %v2164
  %v2166 = vcombine.high %v2158, %v2158
  %v2167 = vcombine.high %v2165, %v2165
  %v2169 = vunpack.c.l.s4 1966171168
  %v2170 = vunpack.c.0.s8 %v2169
  %v2171 = vlaneseq
  %v2172 = vshrl.u32 %v2171, 7
  %v2173 = vsub.s32 %v2170, %v2172
  %v2174 = vrot.slane %v2158, %v2173
  %v2176 = vunpack.c.l.s4 1966171168
  %v2177 = vunpack.c.0.s8 %v2176
  %v2178 = vlaneseq
  %v2179 = vshrl.u32 %v2178, 7
  %v2180 = vsub.s32 %v2177, %v2179
  %v2181 = vrot.slane %v2165, %v2180
  %v2183 = vunpack.c.l.s4 1966171168
  %v2184 = vunpack.c.0.s8 %v2183
  %v2185 = vlaneseq
  %v2186 = vshrl.u32 %v2185, 7
  %v2187 = vsub.s32 %v2184, %v2186
  %v2188 = vrot.slane %v2166, %v2187
  %v2190 = vunpack.c.l.s4 1966171168
  %v2191 = vunpack.c.0.s8 %v2190
  %v2192 = vlaneseq
  %v2193 = vshrl.u32 %v2192, 7
  %v2194 = vsub.s32 %v2191, %v2193
  %v2195 = vrot.slane %v2167, %v2194
  %v2196 = vcombine.high %v2174, %v2174
  %v2197 = vcombine.high %v2181, %v2181
  %v2198 = vcombine.high %v2188, %v2188
  %v2199 = vcombine.high %v2195, %v2195
  %v2200 = vlaneseq
  %v2201 = vshrl.u32 %v2200, 7
  %v2202 = vsub.s32 0, %v2201
  %v2203 = vrot.slane %v2174, %v2202
  %v2204 = vlaneseq
  %v2205 = vshrl.u32 %v2204, 7
  %v2206 = vsub.s32 0, %v2205
  %v2207 = vrot.slane %v2188, %v2206
  %v2208 = vlaneseq
  %v2209 = vshrl.u32 %v2208, 7
  %v2210 = vsub.s32 0, %v2209
  %v2211 = vrot.slane %v2196, %v2210
  %v2212 = vlaneseq
  %v2213 = vshrl.u32 %v2212, 7
  %v2214 = vsub.s32 0, %v2213
  %v2215 = vrot.slane %v2198, %v2214
  %v2216 = vlaneseq
  %v2217 = vshrl.u32 %v2216, 7
  %v2218 = vsub.s32 0, %v2217
  %v2219 = vrot.slane %v2181, %v2218
  %v2220 = vlaneseq
  %v2221 = vshrl.u32 %v2220, 7
  %v2222 = vsub.s32 0, %v2221
  %v2223 = vrot.slane %v2195, %v2222
  %v2224 = vlaneseq
  %v2225 = vshrl.u32 %v2224, 7
  %v2226 = vsub.s32 0, %v2225
  %v2227 = vrot.slane %v2197, %v2226
  %v2228 = vlaneseq
  %v2229 = vshrl.u32 %v2228, 7
  %v2230 = vsub.s32 0, %v2229
  %v2231 = vrot.slane %v2199, %v2230
  %2232 = vrot.lane.b32.xlu0 %v2203, 32
  %v2233 = vpop.permute.xlu0 %2232
  %2234 = vrot.lane.b32.xlu0 %v2207, 32
  %v2235 = vpop.permute.xlu0 %2234
  %2236 = vrot.lane.b32.xlu0 %v2211, 32
  %v2237 = vpop.permute.xlu0 %2236
  %2238 = vrot.lane.b32.xlu0 %v2215, 32
  %v2239 = vpop.permute.xlu0 %2238
  %2240 = vrot.lane.b32.xlu0 %v2219, 32
  %v2241 = vpop.permute.xlu0 %2240
  %2242 = vrot.lane.b32.xlu0 %v2223, 32
  %v2243 = vpop.permute.xlu0 %2242
  %2244 = vrot.lane.b32.xlu0 %v2227, 32
  %v2245 = vpop.permute.xlu0 %2244
  %2246 = vrot.lane.b32.xlu0 %v2231, 32
  %v2247 = vpop.permute.xlu0 %2246
  %2256 = vst.msk [vmem:[%s4 + $0x6] sm:$0x1] %vm406, %v2233
  %2257 = vst.msk [vmem:[%s4 + $0xe] sm:$0x1] %vm406, %v2235
  %2258 = vst.msk [vmem:[%s4 + $0x16] sm:$0x1] %vm406, %v2237
  %2259 = vst.msk [vmem:[%s4 + $0x1e] sm:$0x1] %vm406, %v2239
  %2260 = vst.msk [vmem:[%s4 + $0x26] sm:$0x1] %vm406, %v2241
  %2261 = vst.msk [vmem:[%s4 + $0x2e] sm:$0x1] %vm406, %v2243
  %2262 = vst.msk [vmem:[%s4 + $0x36] sm:$0x1] %vm406, %v2245
  %2263 = vst.msk [vmem:[%s4 + $0x3e] sm:$0x1] %vm406, %v2247
  %v2264 = vld [vmem:[%s0] sm:$0x8]
  %v2265 = vld [vmem:[%s0 + $0x4] sm:$0x8]
  %v2266 = vld [vmem:[%s0 + $0x8] sm:$0x8]
  %v2267 = vld [vmem:[%s0 + $0xc] sm:$0x8]
  %v2268 = vld [vmem:[%s0 + $0x10] sm:$0x8]
  %v2269 = vld [vmem:[%s0 + $0x14] sm:$0x8]
  %v2270 = vld [vmem:[%s0 + $0x18] sm:$0x8]
  %v2271 = vld [vmem:[%s0 + $0x1c] sm:$0x8]
  %v2272 = vld [vmem:[%s32] sm:$0x1]
  %v2273 = vld [vmem:[%s32 + $0x4] sm:$0x1]
  %v2274 = vld [vmem:[%s32 + $0x8] sm:$0x1]
  %v2275 = vld [vmem:[%s32 + $0xc] sm:$0x1]
  %v2276 = vld [vmem:[%s32 + $0x10] sm:$0x1]
  %v2277 = vld [vmem:[%s32 + $0x14] sm:$0x1]
  %v2278 = vld [vmem:[%s32 + $0x18] sm:$0x1]
  %v2279 = vld [vmem:[%s32 + $0x1c] sm:$0x1]
  %v2280 = vpack.c.bf16 %v2149, %v2149
  %v2289 = vunpack.c.l.b16 %v2264
  %v2290 = vunpack.c.l.b16 %v2265
  %v2291 = vunpack.c.l.b16 %v2266
  %v2292 = vunpack.c.l.b16 %v2267
  %v2293 = vunpack.c.l.b16 %v2268
  %v2294 = vunpack.c.l.b16 %v2269
  %v2295 = vunpack.c.l.b16 %v2270
  %v2296 = vunpack.c.l.b16 %v2271
  %v2297 = vpack.c.b16 %v2289, %v2289
  %v2298 = vpack.c.b16 %v2290, %v2290
  %v2299 = vpack.c.b16 %v2291, %v2291
  %v2300 = vpack.c.b16 %v2292, %v2292
  %v2301 = vpack.c.b16 %v2293, %v2293
  %v2302 = vpack.c.b16 %v2294, %v2294
  %v2303 = vpack.c.b16 %v2295, %v2295
  %v2304 = vpack.c.b16 %v2296, %v2296
  %v2305 = vunpack.c.l.b16 %v2297
  %v2306 = vunpack.c.l.b16 %v2298
  %v2307 = vunpack.c.l.b16 %v2299
  %v2308 = vunpack.c.l.b16 %v2300
  %v2309 = vunpack.c.l.b16 %v2301
  %v2310 = vunpack.c.l.b16 %v2302
  %v2311 = vunpack.c.l.b16 %v2303
  %v2312 = vunpack.c.l.b16 %v2304
  %v2313 = vrot.slane %v2306, 7
  %v2314 = vrot.slane %v2307, 6
  %v2315 = vsel %vm113, %v2314, %v2313
  %v2316 = vrot.slane %v2308, 5
  %v2317 = vsel %vm116, %v2316, %v2315
  %v2318 = vrot.slane %v2309, 4
  %v2319 = vsel %vm119, %v2318, %v2317
  %v2320 = vrot.slane %v2310, 3
  %v2321 = vsel %vm122, %v2320, %v2319
  %v2322 = vrot.slane %v2311, 2
  %v2323 = vsel %vm125, %v2322, %v2321
  %v2324 = vrot.slane %v2312, 1
  %v2325 = vsel %vm128, %v2324, %v2323
  %v2326 = vpack.c.b16 %v2325, %v2305
  %v2335 = vunpack.c.l.b16 %v2272
  %v2336 = vunpack.c.l.b16 %v2273
  %v2337 = vunpack.c.l.b16 %v2274
  %v2338 = vunpack.c.l.b16 %v2275
  %v2339 = vunpack.c.l.b16 %v2276
  %v2340 = vunpack.c.l.b16 %v2277
  %v2341 = vunpack.c.l.b16 %v2278
  %v2342 = vunpack.c.l.b16 %v2279
  %v2343 = vpack.c.b16 %v2335, %v2335
  %v2344 = vpack.c.b16 %v2336, %v2336
  %v2345 = vpack.c.b16 %v2337, %v2337
  %v2346 = vpack.c.b16 %v2338, %v2338
  %v2347 = vpack.c.b16 %v2339, %v2339
  %v2348 = vpack.c.b16 %v2340, %v2340
  %v2349 = vpack.c.b16 %v2341, %v2341
  %v2350 = vpack.c.b16 %v2342, %v2342
  %v2351 = vunpack.c.l.b16 %v2343
  %v2352 = vunpack.c.l.b16 %v2344
  %v2353 = vunpack.c.l.b16 %v2345
  %v2354 = vunpack.c.l.b16 %v2346
  %v2355 = vunpack.c.l.b16 %v2347
  %v2356 = vunpack.c.l.b16 %v2348
  %v2357 = vunpack.c.l.b16 %v2349
  %v2358 = vunpack.c.l.b16 %v2350
  %v2359 = vrot.slane %v2351, 1
  %v2360 = vrot.slane %v2353, 7
  %v2361 = vsel %vm113, %v2360, %v2352
  %v2362 = vrot.slane %v2354, 6
  %v2363 = vsel %vm116, %v2362, %v2361
  %v2364 = vrot.slane %v2355, 5
  %v2365 = vsel %vm119, %v2364, %v2363
  %v2366 = vrot.slane %v2356, 4
  %v2367 = vsel %vm122, %v2366, %v2365
  %v2368 = vrot.slane %v2357, 3
  %v2369 = vsel %vm125, %v2368, %v2367
  %v2370 = vrot.slane %v2358, 2
  %v2371 = vsel %vm128, %v2370, %v2369
  %v2372 = vpack.c.b16 %v2371, %v2359
  %2373 = vrot.lane.b32.xlu0 %v2372, 32
  %v2374 = vpop.permute.xlu0 %2373
  %v2376 = vshrl.u32 %v2280, 16
  %v2378 = vrot.slane %v2376, 4
  %v2379 = vshll.u32 %v2280, 16
  %v2381 = vrot.slane %v2379, 5
  %v2382 = vor.u32 %v2378, %v2381
  %2383 = vrot.lane.b32.xlu0 %v2382, 96
  %v2384 = vpop.permute.xlu0 %2383
  %v2387 = vsel %vm186, %v2326, %v2374
  %v2389 = vsel %vm190, %v2387, %v2384
  %v2390 = vshrl.u32 %v2389, 16
  %v2392 = vrot.slane %v2390, 3
  %v2393 = vshll.u32 %v2389, 16
  %v2395 = vrot.slane %v2393, 4
  %v2396 = vor.u32 %v2392, %v2395
  %v2398 = vsel %vm229, %v2396, 0
  %2400 = vmatprep.subr.bf16.mxu0 0
  %2401 = vmatpush1.bf16.msra.mxu0 0
  %2402 = vmatprep.subr.bf16.mxu0 0
  %2403 = vmatpush1.bf16.msra.mxu0 0
  %2404 = vmatprep.subr.bf16.mxu0 0
  %2405 = vmatpush1.bf16.msra.mxu0 %v222
  %2406 = vmatprep.subr.bf16.mxu0 0
  %2407 = vmatpush1.bf16.msra.mxu0 %v221
  %2408 = vmatprep.subr.bf16.mxu0 0
  %2409 = vmatpush1.bf16.msra.mxu0 %v220
  %2410 = vmatprep.subr.bf16.mxu0 0
  %2411 = vmatpush1.bf16.msra.mxu0 %v219
  %2412 = vmatprep.subr.bf16.mxu0 0
  %2413 = vmatpush1.bf16.msra.mxu0 %v218
  %2414 = vmatprep.subr.bf16.mxu0 0
  %2415 = vmatpush1.bf16.msra.mxu0 %v217
  %2416 = vmatprep.subr.bf16.mxu0 0
  %2417 = vmatpush2.bf16.msra.mxu0 0
  %2418 = vmatprep.subr.bf16.mxu0 0
  %2419 = vmatpush2.bf16.msra.mxu0 0
  %2420 = vmatprep.subr.bf16.mxu0 0
  %2421 = vmatpush2.bf16.msra.mxu0 0
  %2422 = vmatprep.subr.bf16.mxu0 0
  %2423 = vmatpush2.bf16.msra.mxu0 0
  %2424 = vmatprep.subr.bf16.mxu0 0
  %2425 = vmatpush2.bf16.msra.mxu0 0
  %2426 = vmatprep.subr.bf16.mxu0 0
  %2427 = vmatpush2.bf16.msra.mxu0 0
  %2428 = vmatprep.subr.bf16.mxu0 0
  %2429 = vmatpush2.bf16.msra.mxu0 0
  %2430 = vmatprep.subr.bf16.mxu0 0
  %2431 = vmatpush2.bf16.msra.mxu0 0
  %2432 = vmatprep.mubr.bf16.mxu0 0
  %2433 = vmatmul.mubr.bf16.gmra.mxu0 %v2398
  %v2434 = vpop.f32.mrf.mxu0
  %v2435 = vadd.f32 %v59, %v2434
  %v2436 = vpop.f32.mrf.mxu0
  %v2437 = vpop.f32.mrf.mxu0
  %v2438 = vpop.f32.mrf.mxu0
  %2439 = vdwg.mxu0
  %v2440 = vxor.u32 %v2435, 2147483648
  %v2441 = vmul.f32 %v2440, 1.442695
  %v2442 = vpow.pop %v2441
  %v2443 = vadd.f32 %v2442, 1.0
  %v2444 = vrcp.pop %v2443
  %v2445 = vmul.f32 1.0, %v2444
  %v2446 = vtanh.pop %v2435
  %v2447 = vmul.f32 %v2445, %v2143
  %2449 = vrot.lane.b32.xlu0 %v2446, 64
  %v2450 = vpop.permute.xlu0 %2449
  %v2452 = vmul.f32 %v2445, %v2450
  %2454 = vrot.lane.b32.xlu0 %v2452, 32
  %v2455 = vpop.permute.xlu0 %2454
  %v2457 = vadd.f32 %v2447, %v2455
  %v2458 = vtanh.pop %v2457
  %2460 = vrot.lane.b32.xlu0 %v2458, 64
  %v2461 = vpop.permute.xlu0 %2460
  %v2463 = vmul.f32 %v2445, %v2461
  %v2465 = vcombine.high %v2463, %v2463
  %v2467 = vunpack.c.l.s4 1966171168
  %v2468 = vunpack.c.0.s8 %v2467
  %v2469 = vlaneseq
  %v2470 = vshrl.u32 %v2469, 7
  %v2471 = vsub.s32 %v2468, %v2470
  %v2472 = vrot.slane %v2463, %v2471
  %v2474 = vunpack.c.l.s4 1966171168
  %v2475 = vunpack.c.0.s8 %v2474
  %v2476 = vlaneseq
  %v2477 = vshrl.u32 %v2476, 7
  %v2478 = vsub.s32 %v2475, %v2477
  %v2479 = vrot.slane %v2465, %v2478
  %v2480 = vcombine.high %v2472, %v2472
  %v2481 = vcombine.high %v2479, %v2479
  %v2483 = vunpack.c.l.s4 1966171168
  %v2484 = vunpack.c.0.s8 %v2483
  %v2485 = vlaneseq
  %v2486 = vshrl.u32 %v2485, 7
  %v2487 = vsub.s32 %v2484, %v2486
  %v2488 = vrot.slane %v2472, %v2487
  %v2490 = vunpack.c.l.s4 1966171168
  %v2491 = vunpack.c.0.s8 %v2490
  %v2492 = vlaneseq
  %v2493 = vshrl.u32 %v2492, 7
  %v2494 = vsub.s32 %v2491, %v2493
  %v2495 = vrot.slane %v2479, %v2494
  %v2497 = vunpack.c.l.s4 1966171168
  %v2498 = vunpack.c.0.s8 %v2497
  %v2499 = vlaneseq
  %v2500 = vshrl.u32 %v2499, 7
  %v2501 = vsub.s32 %v2498, %v2500
  %v2502 = vrot.slane %v2480, %v2501
  %v2504 = vunpack.c.l.s4 1966171168
  %v2505 = vunpack.c.0.s8 %v2504
  %v2506 = vlaneseq
  %v2507 = vshrl.u32 %v2506, 7
  %v2508 = vsub.s32 %v2505, %v2507
  %v2509 = vrot.slane %v2481, %v2508
  %v2510 = vcombine.high %v2488, %v2488
  %v2511 = vcombine.high %v2495, %v2495
  %v2512 = vcombine.high %v2502, %v2502
  %v2513 = vcombine.high %v2509, %v2509
  %v2514 = vlaneseq
  %v2515 = vshrl.u32 %v2514, 7
  %v2516 = vsub.s32 0, %v2515
  %v2517 = vrot.slane %v2488, %v2516
  %v2518 = vlaneseq
  %v2519 = vshrl.u32 %v2518, 7
  %v2520 = vsub.s32 0, %v2519
  %v2521 = vrot.slane %v2502, %v2520
  %v2522 = vlaneseq
  %v2523 = vshrl.u32 %v2522, 7
  %v2524 = vsub.s32 0, %v2523
  %v2525 = vrot.slane %v2510, %v2524
  %v2526 = vlaneseq
  %v2527 = vshrl.u32 %v2526, 7
  %v2528 = vsub.s32 0, %v2527
  %v2529 = vrot.slane %v2512, %v2528
  %v2530 = vlaneseq
  %v2531 = vshrl.u32 %v2530, 7
  %v2532 = vsub.s32 0, %v2531
  %v2533 = vrot.slane %v2495, %v2532
  %v2534 = vlaneseq
  %v2535 = vshrl.u32 %v2534, 7
  %v2536 = vsub.s32 0, %v2535
  %v2537 = vrot.slane %v2509, %v2536
  %v2538 = vlaneseq
  %v2539 = vshrl.u32 %v2538, 7
  %v2540 = vsub.s32 0, %v2539
  %v2541 = vrot.slane %v2511, %v2540
  %v2542 = vlaneseq
  %v2543 = vshrl.u32 %v2542, 7
  %v2544 = vsub.s32 0, %v2543
  %v2545 = vrot.slane %v2513, %v2544
  %2546 = vrot.lane.b32.xlu0 %v2517, 32
  %v2547 = vpop.permute.xlu0 %2546
  %2548 = vrot.lane.b32.xlu0 %v2521, 32
  %v2549 = vpop.permute.xlu0 %2548
  %2550 = vrot.lane.b32.xlu0 %v2525, 32
  %v2551 = vpop.permute.xlu0 %2550
  %2552 = vrot.lane.b32.xlu0 %v2529, 32
  %v2553 = vpop.permute.xlu0 %2552
  %2554 = vrot.lane.b32.xlu0 %v2533, 32
  %v2555 = vpop.permute.xlu0 %2554
  %2556 = vrot.lane.b32.xlu0 %v2537, 32
  %v2557 = vpop.permute.xlu0 %2556
  %2558 = vrot.lane.b32.xlu0 %v2541, 32
  %v2559 = vpop.permute.xlu0 %2558
  %2560 = vrot.lane.b32.xlu0 %v2545, 32
  %v2561 = vpop.permute.xlu0 %2560
  %2570 = vst.msk [vmem:[%s4 + $0x7] sm:$0x1] %vm406, %v2547
  %2571 = vst.msk [vmem:[%s4 + $0xf] sm:$0x1] %vm406, %v2549
  %2572 = vst.msk [vmem:[%s4 + $0x17] sm:$0x1] %vm406, %v2551
  %2573 = vst.msk [vmem:[%s4 + $0x1f] sm:$0x1] %vm406, %v2553
  %2574 = vst.msk [vmem:[%s4 + $0x27] sm:$0x1] %vm406, %v2555
  %2575 = vst.msk [vmem:[%s4 + $0x2f] sm:$0x1] %vm406, %v2557
  %2576 = vst.msk [vmem:[%s4 + $0x37] sm:$0x1] %vm406, %v2559
  %2577 = vst.msk [vmem:[%s4 + $0x3f] sm:$0x1] %vm406, %v2561
  %2578 = vrot.lane.b32.xlu0 %v2463, 32
  %v2579 = vpop.permute.xlu0 %2578
  %2581 = vst.msk [vmem:[#allocation2] sm:$0xff] %vm186, %v2579
  %2583 = vrot.lane.b32.xlu0 %v2457, 96
  %v2584 = vpop.permute.xlu0 %2583
  %2586 = vst.msk [vmem:[#allocation3] sm:$0xff] %vm186, %v2584
  // Predicated region
  $region22: #{bilstm_forward.1} parent=0 // pred_check
    _
  $region23: #{bilstm_forward.1} parent=0 // pred_check_branch
    %2588 = sbr.rel (0) target = $region25
  $region24: #{bilstm_forward.1} parent=0 // pred_region
    _
  $region25: #{bilstm_forward.1} parent=0 // pred_fallthru
    _
  // Predicated region
  $region26: #{bilstm_forward.1} parent=0 // pred_check
    _
  $region27: #{bilstm_forward.1} parent=0 // pred_check_branch
    %2590 = sbr.rel (0) target = $region29
  $region28: #{bilstm_forward.1} parent=0 // pred_region
    _
  $region29: #{bilstm_forward.1} parent=0 // pred_fallthru
    _

</llo_original>
